<compile_context>
chip_gen: v7x
topology: tpu7x:2x2x1
jax: 0.10.0
libtpu: 0.0.40
codegen_flags: <defaults>
</compile_context>

<pallas_src>
from math import exp

import numpy as np
import jax
import jax.numpy as jnp
from jax.experimental import pallas as pl
from jax.experimental.pallas import tpu as pltpu


# fp32 contract precision on the MXU: matches the torch f32 depthwise conv
# (default precision would truncate operands to a single bf16 pass).
_MM_PRECISION = jax.lax.Precision.HIGHEST


# ---------------------------------------------------------------------------
# Host-side constant construction (matches torch's create_window exactly).
# ---------------------------------------------------------------------------
def _gaussian_1d(window_size: int, sigma: float) -> np.ndarray:
    g = np.array(
        [exp(-((x - window_size // 2) ** 2) / float(2 * sigma ** 2))
         for x in range(window_size)],
        dtype=np.float64,
    )
    g = g / g.sum()
    return g.astype(np.float32)


def _band_matrix(length: int, g: np.ndarray) -> np.ndarray:
    """Banded matrix M with (M @ x)[o] = sum_k g[k] * x[o + k - pad], zero-padded."""
    ws = len(g)
    pad = ws // 2
    m = np.zeros((length, length), dtype=np.float32)
    for o in range(length):
        for k in range(ws):
            i = o + k - pad
            if 0 <= i < length:
                m[o, i] += g[k]
    return m


# ---------------------------------------------------------------------------
# Pallas kernel: per grid step, B images packed along lanes -> (H, B*W) slab.
# All five Gaussian filterings are done with ONE left- and ONE right-matmul
# on a (5H, B*W) stacked slab.
# ---------------------------------------------------------------------------
def _ssim_kernel(s5_ref, t_ref, a_ref, b_ref, o_ref):
    a = a_ref[0]            # (H, BW)   f32
    b = b_ref[0]            # (H, BW)   f32
    S5 = s5_ref[...]        # (5H, 5H)  block-diag I_5 ⊗ S (vertical band, zero-pad folded)
    T = t_ref[...]          # (BW, BW)  block-diag horizontal band (I_B ⊗ band_W^T)

    H = a.shape[0]

    # Stack [a, b, a*a, b*b, a*b] along the sublane axis -> one big MXU job.
    x = jnp.concatenate([a, b, a * a, b * b, a * b], axis=0)     # (5H, BW)

    y = jnp.dot(S5, x, preferred_element_type=jnp.float32,
                precision=_MM_PRECISION)                          # vertical conv
    y = jnp.dot(y, T, preferred_element_type=jnp.float32,
                precision=_MM_PRECISION)                          # horizontal conv

    mu1 = y[0 * H:1 * H]
    mu2 = y[1 * H:2 * H]
    e11 = y[2 * H:3 * H]
    e22 = y[3 * H:4 * H]
    e12 = y[4 * H:5 * H]

    mu1_sq = mu1 * mu1
    mu2_sq = mu2 * mu2
    mu1_mu2 = mu1 * mu2
    sigma1_sq = e11 - mu1_sq
    sigma2_sq = e22 - mu2_sq
    sigma12 = e12 - mu1_mu2

    C1 = 0.01 ** 2
    C2 = 0.03 ** 2
    num = (2.0 * mu1_mu2 + C1) * (2.0 * sigma12 + C2)
    den = (mu1_sq + mu2_sq + C1) * (sigma1_sq + sigma2_sq + C2)
    ssim_map = num / den                                          # (H, BW)

    # Lane-dense fused reduction: per-lane column sums (unmasked stores).
    # Per-image lane-group sums happen in the JAX wrapper.
    o_ref[0] = jnp.sum(ssim_map, axis=0, keepdims=True)           # (1, BW)


# ---------------------------------------------------------------------------
# Wrapper: 1 - SSIM(img1, img2), matching SSIMLoss.forward (NCHW inputs).
# ---------------------------------------------------------------------------
def ssim_loss(img1, img2, window_size: int = 11, sigma: float = 1.5,
              size_average: bool = True):
    N, C, H, W = img1.shape
    NC = N * C

    # Pack B images per grid step along the lane axis.  Preference order:
    #   1) B*W a multiple of 128 AND G >= 2 (lane-dense stores + v7x 2-TC split)
    #   2) B*W a multiple of 128
    #   3) G >= 2
    #   4) widest B*W
    # under a <=512 lane cap (B=1 always allowed so huge-W inputs still work).
    LANE_CAP = 512
    best_b, best_score = 1, None
    for cand in range(1, NC + 1):
        if NC % cand != 0:
            continue
        if cand * W > LANE_CAP and cand > 1:
            continue
        bw = cand * W
        g = NC // cand
        score = (int(bw % 128 == 0 and g >= 2), int(bw % 128 == 0),
                 int(g >= 2), bw)
        if best_score is None or score > best_score:
            best_b, best_score = cand, score
    B = best_b
    G = NC // B
    BW = B * W

    g1d = _gaussian_1d(window_size, sigma)
    S_np = _band_matrix(H, g1d)                                    # (H, H)
    S5_np = np.kron(np.eye(5, dtype=np.float32), S_np)             # (5H, 5H)
    T_np = np.kron(np.eye(B, dtype=np.float32),
                   _band_matrix(W, g1d).T)                         # (BW, BW)

    S5 = jnp.asarray(S5_np)
    T = jnp.asarray(T_np)

    def pack(x):
        # (N, C, H, W) -> (G, B, H, W) -> (G, H, B, W) -> (G, H, B*W)
        # NOTE: the transpose costs one extra HBM pass when B > 1; only
        # triggers for small-W inputs where the data is tiny.
        x = x.astype(jnp.float32).reshape(G, B, H, W)
        return jnp.transpose(x, (0, 2, 1, 3)).reshape(G, H, BW)

    a = pack(img1)
    b = pack(img2)

    # Advisory cost hint for the XLA scheduler (flops ~ 2 fused matmuls/step).
    flops = G * (2 * (5 * H) * (5 * H) * BW + 2 * (5 * H) * BW * BW
                 + 30 * H * BW)
    bytes_accessed = G * (2 * H * BW + BW) * 4 + (25 * H * H + BW * BW) * 4
    cost = pl.CostEstimate(flops=flops, transcendentals=0,
                           bytes_accessed=bytes_accessed)

    sums = pl.pallas_call(
        _ssim_kernel,
        out_shape=jax.ShapeDtypeStruct((G, 1, BW), jnp.float32),
        grid=(G,),
        in_specs=[
            pl.BlockSpec((5 * H, 5 * H), lambda i: (0, 0)),   # S5 (fetched once)
            pl.BlockSpec((BW, BW), lambda i: (0, 0)),         # T  (fetched once)
            pl.BlockSpec((1, H, BW), lambda i: (i, 0, 0)),    # img1 block
            pl.BlockSpec((1, H, BW), lambda i: (i, 0, 0)),    # img2 block
        ],
        out_specs=pl.BlockSpec((1, 1, BW), lambda i: (i, 0, 0)),
        compiler_params=pltpu.CompilerParams(
            dimension_semantics=("parallel",),
        ),
        cost_estimate=cost,
    )(S5, T, a, b)

    # Per-image sums: lanes are ordered image-major within each packed block.
    per_image = sums.reshape(G, B, W).sum(axis=-1).reshape(NC)

    if size_average:
        return 1.0 - jnp.sum(per_image) / (NC * H * W)
    else:
        per_sample = per_image.reshape(N, C).sum(axis=1) / (C * H * W)
        return 1.0 - per_sample


if __name__ == "__main__":
    key = jax.random.PRNGKey(0)
    k1, k2 = jax.random.split(key)
    # Small NCHW inputs consistent with the module's forward (values in [0,1],
    # consistent with the C1/C2 = (0.01)^2/(0.03)^2 constants).
    img1 = jax.random.uniform(k1, (2, 4, 16, 16), dtype=jnp.float32)
    img2 = jax.random.uniform(k2, (2, 4, 16, 16), dtype=jnp.float32)

    loss = jax.jit(ssim_loss)(img1, img2)
    jax.block_until_ready(loss)
    print("KERNEL_OK")
</pallas_src>

<mosaic_0001>
module attributes {stable_mosaic.version = 11 : i64} {
  func.func @_ssim_kernel(%arg0: i32, %arg1: memref<80x80xf32, #tpu.memory_space<vmem>>, %arg2: memref<128x128xf32, #tpu.memory_space<vmem>>, %arg3: memref<1x16x128xf32, #tpu.memory_space<vmem>>, %arg4: memref<1x16x128xf32, #tpu.memory_space<vmem>>, %arg5: memref<1x1x128xf32, #tpu.memory_space<vmem>>) attributes {dimension_semantics = [#tpu.dimension_semantics<parallel>], iteration_bounds = array<i64: 1>, scalar_prefetch = 0 : i64, scratch_operands = 0 : i64, tpu.core_type = #tpu.core_type<tc>, window_params = [{pipeline_mode = #tpu.pipeline_mode<synchronous>, transform_indices = @transform_0, window_bounds = array<i64: 80, 80>}, {pipeline_mode = #tpu.pipeline_mode<synchronous>, transform_indices = @transform_1, window_bounds = array<i64: 128, 128>}, {transform_indices = @transform_2, window_bounds = array<i64: 1, 16, 128>}, {transform_indices = @transform_3, window_bounds = array<i64: 1, 16, 128>}, {transform_indices = @transform_4, window_bounds = array<i64: 1, 1, 128>}]} {
    %c0 = arith.constant 0 : index
    %c0_0 = arith.constant 0 : index
    %c0_1 = arith.constant 0 : index
    %0 = vector.load %arg3[%c0, %c0_0, %c0_1] : memref<1x16x128xf32, #tpu.memory_space<vmem>>, vector<1x16x128xf32>
    %1 = vector.shape_cast %0 : vector<1x16x128xf32> to vector<16x128xf32>
    %c0_2 = arith.constant 0 : index
    %c0_3 = arith.constant 0 : index
    %c0_4 = arith.constant 0 : index
    %2 = vector.load %arg4[%c0_2, %c0_3, %c0_4] : memref<1x16x128xf32, #tpu.memory_space<vmem>>, vector<1x16x128xf32>
    %3 = vector.shape_cast %2 : vector<1x16x128xf32> to vector<16x128xf32>
    %c0_5 = arith.constant 0 : index
    %c0_6 = arith.constant 0 : index
    %4 = vector.load %arg1[%c0_5, %c0_6] : memref<80x80xf32, #tpu.memory_space<vmem>>, vector<80x80xf32>
    %c0_7 = arith.constant 0 : index
    %c0_8 = arith.constant 0 : index
    %5 = vector.load %arg2[%c0_7, %c0_8] : memref<128x128xf32, #tpu.memory_space<vmem>>, vector<128x128xf32>
    %6 = arith.mulf %1, %1 : vector<16x128xf32>
    %7 = arith.mulf %3, %3 : vector<16x128xf32>
    %8 = arith.mulf %1, %3 : vector<16x128xf32>
    %9 = tpu.concatenate %1, %3, %6, %7, %8 in 0 : vector<16x128xf32>, vector<16x128xf32>, vector<16x128xf32>, vector<16x128xf32>, vector<16x128xf32> -> vector<80x128xf32>
    %cst = arith.constant dense<0.000000e+00> : vector<80x128xf32>
    %10 = tpu.matmul %4, %9, %cst {dimension_numbers = #tpu.dot_dimension_numbers<[1], [0], [0], [1], [0, 0, 1, 1], [], []>, precision = #tpu.contract_precision<fp32>} : vector<80x80xf32>, vector<80x128xf32>, vector<80x128xf32> -> vector<80x128xf32>
    %cst_9 = arith.constant dense<0.000000e+00> : vector<80x128xf32>
    %11 = tpu.matmul %10, %5, %cst_9 {dimension_numbers = #tpu.dot_dimension_numbers<[1], [0], [0], [1], [0, 0, 1, 1], [], []>, precision = #tpu.contract_precision<fp32>} : vector<80x128xf32>, vector<128x128xf32>, vector<80x128xf32> -> vector<80x128xf32>
    %12 = vector.extract_strided_slice %11 {offsets = [0, 0], sizes = [16, 128], strides = [1, 1]} : vector<80x128xf32> to vector<16x128xf32>
    %13 = vector.extract_strided_slice %11 {offsets = [16, 0], sizes = [16, 128], strides = [1, 1]} : vector<80x128xf32> to vector<16x128xf32>
    %14 = vector.extract_strided_slice %11 {offsets = [32, 0], sizes = [16, 128], strides = [1, 1]} : vector<80x128xf32> to vector<16x128xf32>
    %15 = vector.extract_strided_slice %11 {offsets = [48, 0], sizes = [16, 128], strides = [1, 1]} : vector<80x128xf32> to vector<16x128xf32>
    %16 = vector.extract_strided_slice %11 {offsets = [64, 0], sizes = [16, 128], strides = [1, 1]} : vector<80x128xf32> to vector<16x128xf32>
    %17 = arith.mulf %12, %12 : vector<16x128xf32>
    %18 = arith.mulf %13, %13 : vector<16x128xf32>
    %19 = arith.mulf %12, %13 : vector<16x128xf32>
    %20 = arith.subf %14, %17 : vector<16x128xf32>
    %21 = arith.subf %15, %18 : vector<16x128xf32>
    %22 = arith.subf %16, %19 : vector<16x128xf32>
    %cst_10 = arith.constant 2.000000e+00 : f32
    %23 = vector.broadcast %cst_10 : f32 to vector<16x128xf32>
    %24 = arith.mulf %23, %19 : vector<16x128xf32>
    %cst_11 = arith.constant 9.99999974E-5 : f32
    %25 = vector.broadcast %cst_11 : f32 to vector<16x128xf32>
    %26 = arith.addf %24, %25 : vector<16x128xf32>
    %cst_12 = arith.constant 2.000000e+00 : f32
    %27 = vector.broadcast %cst_12 : f32 to vector<16x128xf32>
    %28 = arith.mulf %27, %22 : vector<16x128xf32>
    %cst_13 = arith.constant 8.99999984E-4 : f32
    %29 = vector.broadcast %cst_13 : f32 to vector<16x128xf32>
    %30 = arith.addf %28, %29 : vector<16x128xf32>
    %31 = arith.mulf %26, %30 : vector<16x128xf32>
    %32 = arith.addf %17, %18 : vector<16x128xf32>
    %cst_14 = arith.constant 9.99999974E-5 : f32
    %33 = vector.broadcast %cst_14 : f32 to vector<16x128xf32>
    %34 = arith.addf %32, %33 : vector<16x128xf32>
    %35 = arith.addf %20, %21 : vector<16x128xf32>
    %cst_15 = arith.constant 8.99999984E-4 : f32
    %36 = vector.broadcast %cst_15 : f32 to vector<16x128xf32>
    %37 = arith.addf %35, %36 : vector<16x128xf32>
    %38 = arith.mulf %34, %37 : vector<16x128xf32>
    %39 = arith.divf %31, %38 : vector<16x128xf32>
    %cst_16 = arith.constant dense<0.000000e+00> : vector<128xf32>
    %40 = vector.multi_reduction <add>, %39, %cst_16 [0] : vector<16x128xf32> to vector<128xf32>
    %41 = vector.shape_cast %40 : vector<128xf32> to vector<1x128xf32>
    %c0_17 = arith.constant 0 : index
    %c0_18 = arith.constant 0 : index
    %c0_19 = arith.constant 0 : index
    %42 = vector.load %arg5[%c0_17, %c0_18, %c0_19] : memref<1x1x128xf32, #tpu.memory_space<vmem>>, vector<1x1x128xf32>
    %43 = vector.shape_cast %42 : vector<1x1x128xf32> to vector<1x128xf32>
    %44 = vector.shape_cast %41 : vector<1x128xf32> to vector<1x1x128xf32>
    tpu.vector_store %arg5[%c0_17, %c0_18, %c0_19], %44 {strides = array<i32>} : memref<1x1x128xf32, #tpu.memory_space<vmem>>, vector<1x1x128xf32>,
    return
  }
  func.func @transform_0(%arg0: i32) -> (i32, i32) {
    %c0_i32 = arith.constant 0 : i32
    %c0_i32_0 = arith.constant 0 : i32
    %c0_i32_1 = arith.constant 0 : i32
    return %c0_i32, %c0_i32_0 : i32, i32
  }
  func.func @transform_1(%arg0: i32) -> (i32, i32) {
    %c0_i32 = arith.constant 0 : i32
    %c0_i32_0 = arith.constant 0 : i32
    %c0_i32_1 = arith.constant 0 : i32
    return %c0_i32, %c0_i32_0 : i32, i32
  }
  func.func @transform_2(%arg0: i32) -> (i32, i32, i32) {
    %c0_i32 = arith.constant 0 : i32
    %c0_i32_0 = arith.constant 0 : i32
    %c0_i32_1 = arith.constant 0 : i32
    return %arg0, %c0_i32, %c0_i32_0 : i32, i32, i32
  }
  func.func @transform_3(%arg0: i32) -> (i32, i32, i32) {
    %c0_i32 = arith.constant 0 : i32
    %c0_i32_0 = arith.constant 0 : i32
    %c0_i32_1 = arith.constant 0 : i32
    return %arg0, %c0_i32, %c0_i32_0 : i32, i32, i32
  }
  func.func @transform_4(%arg0: i32) -> (i32, i32, i32) {
    %c0_i32 = arith.constant 0 : i32
    %c0_i32_0 = arith.constant 0 : i32
    %c0_i32_1 = arith.constant 0 : i32
    return %arg0, %c0_i32, %c0_i32_0 : i32, i32, i32
  }
}

</mosaic_0001>

<llo_original>
// kernel: ssim_loss.1
$region0: #{ssim_loss.1}
  #allocation0 [shape = 'u32[]', space=smem, size = 0x4, offset = 0x4, fixed_abs, tag = 'smem constant byte address 0x4 - core index']
  #allocation1 [shape = 'u32[144,128]{1,0:T(1,128)}', space=vmem, size = 0x12000, scoped, tag = 'internal scratch']
  %s0 = inlined_call_operand.vmem [shape: f32[80,80], index: 0, kind: input, shape index: {}]
  %s1 = inlined_call_operand.vmem [shape: f32[128,128], index: 1, kind: input, shape index: {}]
  %s2 = inlined_call_operand.vmem [shape: f32[1,16,128], index: 2, kind: input, shape index: {}]
  %s3 = inlined_call_operand.vmem [shape: f32[1,16,128], index: 3, kind: input, shape index: {}]
  %s4 = inlined_call_operand.vmem [shape: f32[1,1,128], index: 4, kind: output, shape index: {}]
  %s5 = sld [smem:[#allocation0]]
  $region26: #{ssim_loss.1} parent=0
    _
  %s7 = ssub.s32 1, %s5
  %s8 = scalar_select 0, %s7, %s5
  // Predicated region
  $region2: #{ssim_loss.1} parent=0 // pred_check
    _
  $region3: #{ssim_loss.1} parent=0 // pred_check_branch
    %10 = sbr.rel (0) target = $region5
  $region4: #{ssim_loss.1} parent=0 // pred_region
    _
  $region5: #{ssim_loss.1} parent=0 // pred_fallthru
    _
  // Predicated region
  $region6: #{ssim_loss.1} parent=0 // pred_check
    _
  $region7: #{ssim_loss.1} parent=0 // pred_check_branch
    %12 = sbr.rel (0) target = $region9
  $region8: #{ssim_loss.1} parent=0 // pred_region
    _
  $region9: #{ssim_loss.1} parent=0 // pred_fallthru
    _
  // Predicated region
  $region10: #{ssim_loss.1} parent=0 // pred_check
    _
  $region11: #{ssim_loss.1} parent=0 // pred_check_branch
    %14 = sbr.rel (0) target = $region13
  $region12: #{ssim_loss.1} parent=0 // pred_region
    _
  $region13: #{ssim_loss.1} parent=0 // pred_fallthru
    _
  // Predicated region
  $region14: #{ssim_loss.1} parent=0 // pred_check
    _
  $region15: #{ssim_loss.1} parent=0 // pred_check_branch
    %16 = sbr.rel (0) target = $region17
  $region16: #{ssim_loss.1} parent=0 // pred_region
    _
  $region17: #{ssim_loss.1} parent=0 // pred_fallthru
    _
  %v17 = vld [vmem:[%s2] sm:$0xff]
  %v18 = vld [vmem:[%s2 + $0x8] sm:$0xff]
  %v19 = vld [vmem:[%s3] sm:$0xff]
  %v20 = vld [vmem:[%s3 + $0x8] sm:$0xff]
  %v21 = vld [vmem:[%s0] sm:$0xff]
  %v22 = vld [vmem:[%s0 + $0x8] sm:$0xff]
  %v23 = vld [vmem:[%s0 + $0x10] sm:$0xff]
  %v24 = vld [vmem:[%s0 + $0x18] sm:$0xff]
  %v25 = vld [vmem:[%s0 + $0x20] sm:$0xff]
  %v26 = vld [vmem:[%s0 + $0x28] sm:$0xff]
  %v27 = vld [vmem:[%s0 + $0x30] sm:$0xff]
  %v28 = vld [vmem:[%s0 + $0x38] sm:$0xff]
  %v29 = vld [vmem:[%s0 + $0x40] sm:$0xff]
  %v30 = vld [vmem:[%s0 + $0x48] sm:$0xff]
  %v31 = vld [vmem:[%s1] sm:$0xff]
  %v32 = vld [vmem:[%s1 + $0x8] sm:$0xff]
  %v33 = vld [vmem:[%s1 + $0x10] sm:$0xff]
  %v34 = vld [vmem:[%s1 + $0x18] sm:$0xff]
  %v35 = vld [vmem:[%s1 + $0x20] sm:$0xff]
  %v36 = vld [vmem:[%s1 + $0x28] sm:$0xff]
  %v37 = vld [vmem:[%s1 + $0x30] sm:$0xff]
  %v38 = vld [vmem:[%s1 + $0x38] sm:$0xff]
  %v39 = vld [vmem:[%s1 + $0x40] sm:$0xff]
  %v40 = vld [vmem:[%s1 + $0x48] sm:$0xff]
  %v41 = vld [vmem:[%s1 + $0x50] sm:$0xff]
  %v42 = vld [vmem:[%s1 + $0x58] sm:$0xff]
  %v43 = vld [vmem:[%s1 + $0x60] sm:$0xff]
  %v44 = vld [vmem:[%s1 + $0x68] sm:$0xff]
  %v45 = vld [vmem:[%s1 + $0x70] sm:$0xff]
  %v46 = vld [vmem:[%s1 + $0x78] sm:$0xff]
  %v47 = vmul.f32 %v17, %v17
  %v48 = vmul.f32 %v18, %v18
  %v49 = vmul.f32 %v19, %v19
  %v50 = vmul.f32 %v20, %v20
  %v51 = vmul.f32 %v17, %v19
  %v52 = vmul.f32 %v18, %v20
  %vm53 = vcmask 654336
  %v55 = vsel %vm53, %v21, 0
  %v58 = vsel %vm53, %v22, 0
  %v61 = vsel %vm53, %v23, 0
  %v64 = vsel %vm53, %v24, 0
  %v67 = vsel %vm53, %v25, 0
  %v70 = vsel %vm53, %v26, 0
  %v73 = vsel %vm53, %v27, 0
  %v76 = vsel %vm53, %v28, 0
  %v79 = vsel %vm53, %v29, 0
  %v82 = vsel %vm53, %v30, 0
  %84 = vmatprep.subr.mxu0 0.0
  %v85 = vand.u32 %v17, 4294901760
  %86 = vmatpush1.msra.mxu0 %v85
  %87 = vmatprep.subr.mxu0 0.0
  %v88 = vand.u32 %v18, 4294901760
  %89 = vmatpush1.msra.mxu0 %v88
  %90 = vmatprep.subr.mxu0 0.0
  %v91 = vand.u32 %v19, 4294901760
  %92 = vmatpush1.msra.mxu0 %v91
  %93 = vmatprep.subr.mxu0 0.0
  %v94 = vand.u32 %v20, 4294901760
  %95 = vmatpush1.msra.mxu0 %v94
  %96 = vmatprep.subr.mxu0 0.0
  %v97 = vand.u32 %v47, 4294901760
  %98 = vmatpush1.msra.mxu0 %v97
  %99 = vmatprep.subr.mxu0 0.0
  %v100 = vand.u32 %v48, 4294901760
  %101 = vmatpush1.msra.mxu0 %v100
  %102 = vmatprep.subr.mxu0 0.0
  %v103 = vand.u32 %v49, 4294901760
  %104 = vmatpush1.msra.mxu0 %v103
  %105 = vmatprep.subr.mxu0 0.0
  %v106 = vand.u32 %v50, 4294901760
  %107 = vmatpush1.msra.mxu0 %v106
  %108 = vmatprep.subr.mxu0 0.0
  %v109 = vand.u32 %v51, 4294901760
  %110 = vmatpush1.msra.mxu0 %v109
  %111 = vmatprep.subr.mxu0 0.0
  %v112 = vand.u32 %v52, 4294901760
  %113 = vmatpush1.msra.mxu0 %v112
  %114 = vmatprep.subr.mxu0 0.0
  %115 = vmatpush1.msra.mxu0 0.0
  %116 = vmatprep.subr.mxu0 0.0
  %117 = vmatpush1.msra.mxu0 0.0
  %118 = vmatprep.subr.mxu0 0.0
  %119 = vmatpush1.msra.mxu0 0.0
  %120 = vmatprep.subr.mxu0 0.0
  %121 = vmatpush1.msra.mxu0 0.0
  %122 = vmatprep.subr.mxu0 0.0
  %123 = vmatpush1.msra.mxu0 0.0
  %124 = vmatprep.subr.mxu0 0.0
  %125 = vmatpush1.msra.mxu0 0.0
  %126 = vmatprep.subr.mxu0 0.0
  %127 = vmatpush1.msra.mxu0 0.0
  %128 = vmatprep.subr.mxu0 0.0
  %129 = vmatpush1.msra.mxu0 0.0
  %130 = vmatprep.subr.mxu0 0.0
  %131 = vmatpush1.msra.mxu0 0.0
  %132 = vmatprep.subr.mxu0 0.0
  %133 = vmatpush1.msra.mxu0 0.0
  %134 = vmatprep.subr.mxu0 0.0
  %135 = vmatpush1.msra.mxu0 0.0
  %136 = vmatprep.subr.mxu0 0.0
  %137 = vmatpush1.msra.mxu0 0.0
  %138 = vmatprep.subr.mxu0 0.0
  %139 = vmatpush1.msra.mxu0 0.0
  %140 = vmatprep.subr.mxu0 0.0
  %141 = vmatpush1.msra.mxu0 0.0
  %142 = vmatprep.subr.mxu0 0.0
  %143 = vmatpush1.msra.mxu0 0.0
  %144 = vmatprep.subr.mxu0 0.0
  %145 = vmatpush1.msra.mxu0 0.0
  %146 = vmatprep.subr.mxu0 0.0
  %147 = vmatpush1.msra.mxu0 0.0
  %148 = vmatprep.subr.mxu0 0.0
  %149 = vmatpush1.msra.mxu0 0.0
  %150 = vmatprep.subr.mxu0 0.0
  %151 = vmatpush1.msra.mxu0 0.0
  %152 = vmatprep.subr.mxu0 0.0
  %153 = vmatpush1.msra.mxu0 0.0
  %154 = vmatprep.subr.mxu0 0.0
  %155 = vmatpush1.msra.mxu0 0.0
  %156 = vmatprep.subr.mxu0 0.0
  %157 = vmatpush1.msra.mxu0 0.0
  %158 = vmatprep.mubr.f32.mxu0 0.0
  %v159 = vand.u32 %v55, 4294901760
  %v160 = vsub.f32 %v55, %v159
  %v161 = vand.u32 %v160, 4294901760
  %v162 = vsub.f32 %v160, %v161
  %v163 = vand.u32 %v162, 4294901760
  %164 = vmatmul.mubr.f32.gmra.mrb[0].mxu0 %v163
  %v165 = vpop.f32.mrb[0].mxu0
  %v166 = vadd.f32 0.0, %v165
  %v167 = vpop.f32.mrb[0].mxu0
  %168 = vmatprep.mubr.f32.mxu0 0.0
  %v169 = vand.u32 %v58, 4294901760
  %v170 = vsub.f32 %v58, %v169
  %v171 = vand.u32 %v170, 4294901760
  %v172 = vsub.f32 %v170, %v171
  %v173 = vand.u32 %v172, 4294901760
  %174 = vmatmul.mubr.f32.gmra.mrb[0].mxu0 %v173
  %v175 = vpop.f32.mrb[0].mxu0
  %v176 = vadd.f32 0.0, %v175
  %v177 = vpop.f32.mrb[0].mxu0
  %178 = vmatprep.mubr.f32.mxu0 0.0
  %v179 = vand.u32 %v61, 4294901760
  %v180 = vsub.f32 %v61, %v179
  %v181 = vand.u32 %v180, 4294901760
  %v182 = vsub.f32 %v180, %v181
  %v183 = vand.u32 %v182, 4294901760
  %184 = vmatmul.mubr.f32.gmra.mrb[0].mxu0 %v183
  %v185 = vpop.f32.mrb[0].mxu0
  %v186 = vadd.f32 0.0, %v185
  %v187 = vpop.f32.mrb[0].mxu0
  %188 = vmatprep.mubr.f32.mxu0 0.0
  %v189 = vand.u32 %v64, 4294901760
  %v190 = vsub.f32 %v64, %v189
  %v191 = vand.u32 %v190, 4294901760
  %v192 = vsub.f32 %v190, %v191
  %v193 = vand.u32 %v192, 4294901760
  %194 = vmatmul.mubr.f32.gmra.mrb[0].mxu0 %v193
  %v195 = vpop.f32.mrb[0].mxu0
  %v196 = vadd.f32 0.0, %v195
  %v197 = vpop.f32.mrb[0].mxu0
  %198 = vmatprep.mubr.f32.mxu0 0.0
  %v199 = vand.u32 %v67, 4294901760
  %v200 = vsub.f32 %v67, %v199
  %v201 = vand.u32 %v200, 4294901760
  %v202 = vsub.f32 %v200, %v201
  %v203 = vand.u32 %v202, 4294901760
  %204 = vmatmul.mubr.f32.gmra.mrb[0].mxu0 %v203
  %v205 = vpop.f32.mrb[0].mxu0
  %v206 = vadd.f32 0.0, %v205
  %v207 = vpop.f32.mrb[0].mxu0
  %208 = vmatprep.mubr.f32.mxu0 0.0
  %v209 = vand.u32 %v70, 4294901760
  %v210 = vsub.f32 %v70, %v209
  %v211 = vand.u32 %v210, 4294901760
  %v212 = vsub.f32 %v210, %v211
  %v213 = vand.u32 %v212, 4294901760
  %214 = vmatmul.mubr.f32.gmra.mrb[0].mxu0 %v213
  %v215 = vpop.f32.mrb[0].mxu0
  %v216 = vadd.f32 0.0, %v215
  %v217 = vpop.f32.mrb[0].mxu0
  %218 = vmatprep.mubr.f32.mxu0 0.0
  %v219 = vand.u32 %v73, 4294901760
  %v220 = vsub.f32 %v73, %v219
  %v221 = vand.u32 %v220, 4294901760
  %v222 = vsub.f32 %v220, %v221
  %v223 = vand.u32 %v222, 4294901760
  %224 = vmatmul.mubr.f32.gmra.mrb[0].mxu0 %v223
  %v225 = vpop.f32.mrb[0].mxu0
  %v226 = vadd.f32 0.0, %v225
  %v227 = vpop.f32.mrb[0].mxu0
  %228 = vmatprep.mubr.f32.mxu0 0.0
  %v229 = vand.u32 %v76, 4294901760
  %v230 = vsub.f32 %v76, %v229
  %v231 = vand.u32 %v230, 4294901760
  %v232 = vsub.f32 %v230, %v231
  %v233 = vand.u32 %v232, 4294901760
  %234 = vmatmul.mubr.f32.gmra.mrb[0].mxu0 %v233
  %v235 = vpop.f32.mrb[0].mxu0
  %v236 = vadd.f32 0.0, %v235
  %v237 = vpop.f32.mrb[0].mxu0
  %238 = vmatprep.mubr.f32.mxu0 0.0
  %v239 = vand.u32 %v79, 4294901760
  %v240 = vsub.f32 %v79, %v239
  %v241 = vand.u32 %v240, 4294901760
  %v242 = vsub.f32 %v240, %v241
  %v243 = vand.u32 %v242, 4294901760
  %244 = vmatmul.mubr.f32.gmra.mrb[0].mxu0 %v243
  %v245 = vpop.f32.mrb[0].mxu0
  %v246 = vadd.f32 0.0, %v245
  %v247 = vpop.f32.mrb[0].mxu0
  %248 = vmatprep.mubr.f32.mxu0 0.0
  %v249 = vand.u32 %v82, 4294901760
  %v250 = vsub.f32 %v82, %v249
  %v251 = vand.u32 %v250, 4294901760
  %v252 = vsub.f32 %v250, %v251
  %v253 = vand.u32 %v252, 4294901760
  %254 = vmatmul.mubr.f32.gmra.mrb[0].mxu0 %v253
  %v255 = vpop.f32.mrb[0].mxu0
  %v256 = vadd.f32 0.0, %v255
  %v257 = vpop.f32.mrb[0].mxu0
  %258 = vdwg.mxu0
  %259 = vmatprep.subr.mxu0 0.0
  %v260 = vand.u32 %v17, 4294901760
  %v261 = vsub.f32 %v17, %v260
  %v262 = vand.u32 %v261, 4294901760
  %v263 = vsub.f32 %v261, %v262
  %v264 = vand.u32 %v263, 4294901760
  %265 = vmatpush1.msra.mxu0 %v264
  %266 = vmatprep.subr.mxu0 0.0
  %v267 = vand.u32 %v18, 4294901760
  %v268 = vsub.f32 %v18, %v267
  %v269 = vand.u32 %v268, 4294901760
  %v270 = vsub.f32 %v268, %v269
  %v271 = vand.u32 %v270, 4294901760
  %272 = vmatpush1.msra.mxu0 %v271
  %273 = vmatprep.subr.mxu0 0.0
  %v274 = vand.u32 %v19, 4294901760
  %v275 = vsub.f32 %v19, %v274
  %v276 = vand.u32 %v275, 4294901760
  %v277 = vsub.f32 %v275, %v276
  %v278 = vand.u32 %v277, 4294901760
  %279 = vmatpush1.msra.mxu0 %v278
  %280 = vmatprep.subr.mxu0 0.0
  %v281 = vand.u32 %v20, 4294901760
  %v282 = vsub.f32 %v20, %v281
  %v283 = vand.u32 %v282, 4294901760
  %v284 = vsub.f32 %v282, %v283
  %v285 = vand.u32 %v284, 4294901760
  %286 = vmatpush1.msra.mxu0 %v285
  %287 = vmatprep.subr.mxu0 0.0
  %v288 = vand.u32 %v47, 4294901760
  %v289 = vsub.f32 %v47, %v288
  %v290 = vand.u32 %v289, 4294901760
  %v291 = vsub.f32 %v289, %v290
  %v292 = vand.u32 %v291, 4294901760
  %293 = vmatpush1.msra.mxu0 %v292
  %294 = vmatprep.subr.mxu0 0.0
  %v295 = vand.u32 %v48, 4294901760
  %v296 = vsub.f32 %v48, %v295
  %v297 = vand.u32 %v296, 4294901760
  %v298 = vsub.f32 %v296, %v297
  %v299 = vand.u32 %v298, 4294901760
  %300 = vmatpush1.msra.mxu0 %v299
  %301 = vmatprep.subr.mxu0 0.0
  %v302 = vand.u32 %v49, 4294901760
  %v303 = vsub.f32 %v49, %v302
  %v304 = vand.u32 %v303, 4294901760
  %v305 = vsub.f32 %v303, %v304
  %v306 = vand.u32 %v305, 4294901760
  %307 = vmatpush1.msra.mxu0 %v306
  %308 = vmatprep.subr.mxu0 0.0
  %v309 = vand.u32 %v50, 4294901760
  %v310 = vsub.f32 %v50, %v309
  %v311 = vand.u32 %v310, 4294901760
  %v312 = vsub.f32 %v310, %v311
  %v313 = vand.u32 %v312, 4294901760
  %314 = vmatpush1.msra.mxu0 %v313
  %315 = vmatprep.subr.mxu0 0.0
  %v316 = vand.u32 %v51, 4294901760
  %v317 = vsub.f32 %v51, %v316
  %v318 = vand.u32 %v317, 4294901760
  %v319 = vsub.f32 %v317, %v318
  %v320 = vand.u32 %v319, 4294901760
  %321 = vmatpush1.msra.mxu0 %v320
  %322 = vmatprep.subr.mxu0 0.0
  %v323 = vand.u32 %v52, 4294901760
  %v324 = vsub.f32 %v52, %v323
  %v325 = vand.u32 %v324, 4294901760
  %v326 = vsub.f32 %v324, %v325
  %v327 = vand.u32 %v326, 4294901760
  %328 = vmatpush1.msra.mxu0 %v327
  %329 = vmatprep.subr.mxu0 0.0
  %330 = vmatpush1.msra.mxu0 0.0
  %331 = vmatprep.subr.mxu0 0.0
  %332 = vmatpush1.msra.mxu0 0.0
  %333 = vmatprep.subr.mxu0 0.0
  %334 = vmatpush1.msra.mxu0 0.0
  %335 = vmatprep.subr.mxu0 0.0
  %336 = vmatpush1.msra.mxu0 0.0
  %337 = vmatprep.subr.mxu0 0.0
  %338 = vmatpush1.msra.mxu0 0.0
  %339 = vmatprep.subr.mxu0 0.0
  %340 = vmatpush1.msra.mxu0 0.0
  %341 = vmatprep.subr.mxu0 0.0
  %342 = vmatpush1.msra.mxu0 0.0
  %343 = vmatprep.subr.mxu0 0.0
  %344 = vmatpush1.msra.mxu0 0.0
  %345 = vmatprep.subr.mxu0 0.0
  %346 = vmatpush1.msra.mxu0 0.0
  %347 = vmatprep.subr.mxu0 0.0
  %348 = vmatpush1.msra.mxu0 0.0
  %349 = vmatprep.subr.mxu0 0.0
  %350 = vmatpush1.msra.mxu0 0.0
  %351 = vmatprep.subr.mxu0 0.0
  %352 = vmatpush1.msra.mxu0 0.0
  %353 = vmatprep.subr.mxu0 0.0
  %354 = vmatpush1.msra.mxu0 0.0
  %355 = vmatprep.subr.mxu0 0.0
  %356 = vmatpush1.msra.mxu0 0.0
  %357 = vmatprep.subr.mxu0 0.0
  %358 = vmatpush1.msra.mxu0 0.0
  %359 = vmatprep.subr.mxu0 0.0
  %360 = vmatpush1.msra.mxu0 0.0
  %361 = vmatprep.subr.mxu0 0.0
  %362 = vmatpush1.msra.mxu0 0.0
  %363 = vmatprep.subr.mxu0 0.0
  %364 = vmatpush1.msra.mxu0 0.0
  %365 = vmatprep.subr.mxu0 0.0
  %366 = vmatpush1.msra.mxu0 0.0
  %367 = vmatprep.subr.mxu0 0.0
  %368 = vmatpush1.msra.mxu0 0.0
  %369 = vmatprep.subr.mxu0 0.0
  %370 = vmatpush1.msra.mxu0 0.0
  %371 = vmatprep.subr.mxu0 0.0
  %372 = vmatpush1.msra.mxu0 0.0
  %373 = vmatprep.mubr.f32.mxu0 0.0
  %v374 = vand.u32 %v55, 4294901760
  %375 = vmatmul.mubr.f32.gmra.mrb[0].mxu0 %v374
  %v376 = vpop.f32.mrb[0].mxu0
  %v377 = vadd.f32 %v166, %v376
  %v378 = vpop.f32.mrb[0].mxu0
  %379 = vmatprep.mubr.f32.mxu0 0.0
  %v380 = vand.u32 %v58, 4294901760
  %381 = vmatmul.mubr.f32.gmra.mrb[0].mxu0 %v380
  %v382 = vpop.f32.mrb[0].mxu0
  %v383 = vadd.f32 %v176, %v382
  %v384 = vpop.f32.mrb[0].mxu0
  %385 = vmatprep.mubr.f32.mxu0 0.0
  %v386 = vand.u32 %v61, 4294901760
  %387 = vmatmul.mubr.f32.gmra.mrb[0].mxu0 %v386
  %v388 = vpop.f32.mrb[0].mxu0
  %v389 = vadd.f32 %v186, %v388
  %v390 = vpop.f32.mrb[0].mxu0
  %391 = vmatprep.mubr.f32.mxu0 0.0
  %v392 = vand.u32 %v64, 4294901760
  %393 = vmatmul.mubr.f32.gmra.mrb[0].mxu0 %v392
  %v394 = vpop.f32.mrb[0].mxu0
  %v395 = vadd.f32 %v196, %v394
  %v396 = vpop.f32.mrb[0].mxu0
  %397 = vmatprep.mubr.f32.mxu0 0.0
  %v398 = vand.u32 %v67, 4294901760
  %399 = vmatmul.mubr.f32.gmra.mrb[0].mxu0 %v398
  %v400 = vpop.f32.mrb[0].mxu0
  %v401 = vadd.f32 %v206, %v400
  %v402 = vpop.f32.mrb[0].mxu0
  %403 = vmatprep.mubr.f32.mxu0 0.0
  %v404 = vand.u32 %v70, 4294901760
  %405 = vmatmul.mubr.f32.gmra.mrb[0].mxu0 %v404
  %v406 = vpop.f32.mrb[0].mxu0
  %v407 = vadd.f32 %v216, %v406
  %v408 = vpop.f32.mrb[0].mxu0
  %409 = vmatprep.mubr.f32.mxu0 0.0
  %v410 = vand.u32 %v73, 4294901760
  %411 = vmatmul.mubr.f32.gmra.mrb[0].mxu0 %v410
  %v412 = vpop.f32.mrb[0].mxu0
  %v413 = vadd.f32 %v226, %v412
  %v414 = vpop.f32.mrb[0].mxu0
  %415 = vmatprep.mubr.f32.mxu0 0.0
  %v416 = vand.u32 %v76, 4294901760
  %417 = vmatmul.mubr.f32.gmra.mrb[0].mxu0 %v416
  %v418 = vpop.f32.mrb[0].mxu0
  %v419 = vadd.f32 %v236, %v418
  %v420 = vpop.f32.mrb[0].mxu0
  %421 = vmatprep.mubr.f32.mxu0 0.0
  %v422 = vand.u32 %v79, 4294901760
  %423 = vmatmul.mubr.f32.gmra.mrb[0].mxu0 %v422
  %v424 = vpop.f32.mrb[0].mxu0
  %v425 = vadd.f32 %v246, %v424
  %v426 = vpop.f32.mrb[0].mxu0
  %427 = vmatprep.mubr.f32.mxu0 0.0
  %v428 = vand.u32 %v82, 4294901760
  %429 = vmatmul.mubr.f32.gmra.mrb[0].mxu0 %v428
  %v430 = vpop.f32.mrb[0].mxu0
  %v431 = vadd.f32 %v256, %v430
  %v432 = vpop.f32.mrb[0].mxu0
  %433 = vdwg.mxu0
  %434 = vmatprep.subr.mxu0 0.0
  %v435 = vand.u32 %v17, 4294901760
  %v436 = vsub.f32 %v17, %v435
  %437 = vmatpush1.msra.mxu0 %v436
  %438 = vmatprep.subr.mxu0 0.0
  %v439 = vand.u32 %v18, 4294901760
  %v440 = vsub.f32 %v18, %v439
  %441 = vmatpush1.msra.mxu0 %v440
  %442 = vmatprep.subr.mxu0 0.0
  %v443 = vand.u32 %v19, 4294901760
  %v444 = vsub.f32 %v19, %v443
  %445 = vmatpush1.msra.mxu0 %v444
  %446 = vmatprep.subr.mxu0 0.0
  %v447 = vand.u32 %v20, 4294901760
  %v448 = vsub.f32 %v20, %v447
  %449 = vmatpush1.msra.mxu0 %v448
  %450 = vmatprep.subr.mxu0 0.0
  %v451 = vand.u32 %v47, 4294901760
  %v452 = vsub.f32 %v47, %v451
  %453 = vmatpush1.msra.mxu0 %v452
  %454 = vmatprep.subr.mxu0 0.0
  %v455 = vand.u32 %v48, 4294901760
  %v456 = vsub.f32 %v48, %v455
  %457 = vmatpush1.msra.mxu0 %v456
  %458 = vmatprep.subr.mxu0 0.0
  %v459 = vand.u32 %v49, 4294901760
  %v460 = vsub.f32 %v49, %v459
  %461 = vmatpush1.msra.mxu0 %v460
  %462 = vmatprep.subr.mxu0 0.0
  %v463 = vand.u32 %v50, 4294901760
  %v464 = vsub.f32 %v50, %v463
  %465 = vmatpush1.msra.mxu0 %v464
  %466 = vmatprep.subr.mxu0 0.0
  %v467 = vand.u32 %v51, 4294901760
  %v468 = vsub.f32 %v51, %v467
  %469 = vmatpush1.msra.mxu0 %v468
  %470 = vmatprep.subr.mxu0 0.0
  %v471 = vand.u32 %v52, 4294901760
  %v472 = vsub.f32 %v52, %v471
  %473 = vmatpush1.msra.mxu0 %v472
  %474 = vmatprep.subr.mxu0 0.0
  %475 = vmatpush1.msra.mxu0 0.0
  %476 = vmatprep.subr.mxu0 0.0
  %477 = vmatpush1.msra.mxu0 0.0
  %478 = vmatprep.subr.mxu0 0.0
  %479 = vmatpush1.msra.mxu0 0.0
  %480 = vmatprep.subr.mxu0 0.0
  %481 = vmatpush1.msra.mxu0 0.0
  %482 = vmatprep.subr.mxu0 0.0
  %483 = vmatpush1.msra.mxu0 0.0
  %484 = vmatprep.subr.mxu0 0.0
  %485 = vmatpush1.msra.mxu0 0.0
  %486 = vmatprep.subr.mxu0 0.0
  %487 = vmatpush1.msra.mxu0 0.0
  %488 = vmatprep.subr.mxu0 0.0
  %489 = vmatpush1.msra.mxu0 0.0
  %490 = vmatprep.subr.mxu0 0.0
  %491 = vmatpush1.msra.mxu0 0.0
  %492 = vmatprep.subr.mxu0 0.0
  %493 = vmatpush1.msra.mxu0 0.0
  %494 = vmatprep.subr.mxu0 0.0
  %495 = vmatpush1.msra.mxu0 0.0
  %496 = vmatprep.subr.mxu0 0.0
  %497 = vmatpush1.msra.mxu0 0.0
  %498 = vmatprep.subr.mxu0 0.0
  %499 = vmatpush1.msra.mxu0 0.0
  %500 = vmatprep.subr.mxu0 0.0
  %501 = vmatpush1.msra.mxu0 0.0
  %502 = vmatprep.subr.mxu0 0.0
  %503 = vmatpush1.msra.mxu0 0.0
  %504 = vmatprep.subr.mxu0 0.0
  %505 = vmatpush1.msra.mxu0 0.0
  %506 = vmatprep.subr.mxu0 0.0
  %507 = vmatpush1.msra.mxu0 0.0
  %508 = vmatprep.subr.mxu0 0.0
  %509 = vmatpush1.msra.mxu0 0.0
  %510 = vmatprep.subr.mxu0 0.0
  %511 = vmatpush1.msra.mxu0 0.0
  %512 = vmatprep.subr.mxu0 0.0
  %513 = vmatpush1.msra.mxu0 0.0
  %514 = vmatprep.subr.mxu0 0.0
  %515 = vmatpush1.msra.mxu0 0.0
  %516 = vmatprep.subr.mxu0 0.0
  %517 = vmatpush1.msra.mxu0 0.0
  %518 = vmatprep.mubr.f32.mxu0 0.0
  %v519 = vand.u32 %v55, 4294901760
  %v520 = vsub.f32 %v55, %v519
  %521 = vmatmul.mubr.f32.gmra.mrb[0].mxu0 %v520
  %v522 = vpop.f32.mrb[0].mxu0
  %v523 = vadd.f32 %v377, %v522
  %v524 = vpop.f32.mrb[0].mxu0
  %525 = vmatprep.mubr.f32.mxu0 0.0
  %v526 = vand.u32 %v58, 4294901760
  %v527 = vsub.f32 %v58, %v526
  %528 = vmatmul.mubr.f32.gmra.mrb[0].mxu0 %v527
  %v529 = vpop.f32.mrb[0].mxu0
  %v530 = vadd.f32 %v383, %v529
  %v531 = vpop.f32.mrb[0].mxu0
  %532 = vmatprep.mubr.f32.mxu0 0.0
  %v533 = vand.u32 %v61, 4294901760
  %v534 = vsub.f32 %v61, %v533
  %535 = vmatmul.mubr.f32.gmra.mrb[0].mxu0 %v534
  %v536 = vpop.f32.mrb[0].mxu0
  %v537 = vadd.f32 %v389, %v536
  %v538 = vpop.f32.mrb[0].mxu0
  %539 = vmatprep.mubr.f32.mxu0 0.0
  %v540 = vand.u32 %v64, 4294901760
  %v541 = vsub.f32 %v64, %v540
  %542 = vmatmul.mubr.f32.gmra.mrb[0].mxu0 %v541
  %v543 = vpop.f32.mrb[0].mxu0
  %v544 = vadd.f32 %v395, %v543
  %v545 = vpop.f32.mrb[0].mxu0
  %546 = vmatprep.mubr.f32.mxu0 0.0
  %v547 = vand.u32 %v67, 4294901760
  %v548 = vsub.f32 %v67, %v547
  %549 = vmatmul.mubr.f32.gmra.mrb[0].mxu0 %v548
  %v550 = vpop.f32.mrb[0].mxu0
  %v551 = vadd.f32 %v401, %v550
  %v552 = vpop.f32.mrb[0].mxu0
  %553 = vmatprep.mubr.f32.mxu0 0.0
  %v554 = vand.u32 %v70, 4294901760
  %v555 = vsub.f32 %v70, %v554
  %556 = vmatmul.mubr.f32.gmra.mrb[0].mxu0 %v555
  %v557 = vpop.f32.mrb[0].mxu0
  %v558 = vadd.f32 %v407, %v557
  %v559 = vpop.f32.mrb[0].mxu0
  %560 = vmatprep.mubr.f32.mxu0 0.0
  %v561 = vand.u32 %v73, 4294901760
  %v562 = vsub.f32 %v73, %v561
  %563 = vmatmul.mubr.f32.gmra.mrb[0].mxu0 %v562
  %v564 = vpop.f32.mrb[0].mxu0
  %v565 = vadd.f32 %v413, %v564
  %v566 = vpop.f32.mrb[0].mxu0
  %567 = vmatprep.mubr.f32.mxu0 0.0
  %v568 = vand.u32 %v76, 4294901760
  %v569 = vsub.f32 %v76, %v568
  %570 = vmatmul.mubr.f32.gmra.mrb[0].mxu0 %v569
  %v571 = vpop.f32.mrb[0].mxu0
  %v572 = vadd.f32 %v419, %v571
  %v573 = vpop.f32.mrb[0].mxu0
  %574 = vmatprep.mubr.f32.mxu0 0.0
  %v575 = vand.u32 %v79, 4294901760
  %v576 = vsub.f32 %v79, %v575
  %577 = vmatmul.mubr.f32.gmra.mrb[0].mxu0 %v576
  %v578 = vpop.f32.mrb[0].mxu0
  %v579 = vadd.f32 %v425, %v578
  %v580 = vpop.f32.mrb[0].mxu0
  %581 = vmatprep.mubr.f32.mxu0 0.0
  %v582 = vand.u32 %v82, 4294901760
  %v583 = vsub.f32 %v82, %v582
  %584 = vmatmul.mubr.f32.gmra.mrb[0].mxu0 %v583
  %v585 = vpop.f32.mrb[0].mxu0
  %v586 = vadd.f32 %v431, %v585
  %v587 = vpop.f32.mrb[0].mxu0
  %588 = vdwg.mxu0
  %589 = vmatprep.subr.mxu0 0.0
  %v590 = vand.u32 %v17, 4294901760
  %591 = vmatpush1.msra.mxu0 %v590
  %592 = vmatprep.subr.mxu0 0.0
  %v593 = vand.u32 %v18, 4294901760
  %594 = vmatpush1.msra.mxu0 %v593
  %595 = vmatprep.subr.mxu0 0.0
  %v596 = vand.u32 %v19, 4294901760
  %597 = vmatpush1.msra.mxu0 %v596
  %598 = vmatprep.subr.mxu0 0.0
  %v599 = vand.u32 %v20, 4294901760
  %600 = vmatpush1.msra.mxu0 %v599
  %601 = vmatprep.subr.mxu0 0.0
  %v602 = vand.u32 %v47, 4294901760
  %603 = vmatpush1.msra.mxu0 %v602
  %604 = vmatprep.subr.mxu0 0.0
  %v605 = vand.u32 %v48, 4294901760
  %606 = vmatpush1.msra.mxu0 %v605
  %607 = vmatprep.subr.mxu0 0.0
  %v608 = vand.u32 %v49, 4294901760
  %609 = vmatpush1.msra.mxu0 %v608
  %610 = vmatprep.subr.mxu0 0.0
  %v611 = vand.u32 %v50, 4294901760
  %612 = vmatpush1.msra.mxu0 %v611
  %613 = vmatprep.subr.mxu0 0.0
  %v614 = vand.u32 %v51, 4294901760
  %615 = vmatpush1.msra.mxu0 %v614
  %616 = vmatprep.subr.mxu0 0.0
  %v617 = vand.u32 %v52, 4294901760
  %618 = vmatpush1.msra.mxu0 %v617
  %619 = vmatprep.subr.mxu0 0.0
  %620 = vmatpush1.msra.mxu0 0.0
  %621 = vmatprep.subr.mxu0 0.0
  %622 = vmatpush1.msra.mxu0 0.0
  %623 = vmatprep.subr.mxu0 0.0
  %624 = vmatpush1.msra.mxu0 0.0
  %625 = vmatprep.subr.mxu0 0.0
  %626 = vmatpush1.msra.mxu0 0.0
  %627 = vmatprep.subr.mxu0 0.0
  %628 = vmatpush1.msra.mxu0 0.0
  %629 = vmatprep.subr.mxu0 0.0
  %630 = vmatpush1.msra.mxu0 0.0
  %631 = vmatprep.subr.mxu0 0.0
  %632 = vmatpush1.msra.mxu0 0.0
  %633 = vmatprep.subr.mxu0 0.0
  %634 = vmatpush1.msra.mxu0 0.0
  %635 = vmatprep.subr.mxu0 0.0
  %636 = vmatpush1.msra.mxu0 0.0
  %637 = vmatprep.subr.mxu0 0.0
  %638 = vmatpush1.msra.mxu0 0.0
  %639 = vmatprep.subr.mxu0 0.0
  %640 = vmatpush1.msra.mxu0 0.0
  %641 = vmatprep.subr.mxu0 0.0
  %642 = vmatpush1.msra.mxu0 0.0
  %643 = vmatprep.subr.mxu0 0.0
  %644 = vmatpush1.msra.mxu0 0.0
  %645 = vmatprep.subr.mxu0 0.0
  %646 = vmatpush1.msra.mxu0 0.0
  %647 = vmatprep.subr.mxu0 0.0
  %648 = vmatpush1.msra.mxu0 0.0
  %649 = vmatprep.subr.mxu0 0.0
  %650 = vmatpush1.msra.mxu0 0.0
  %651 = vmatprep.subr.mxu0 0.0
  %652 = vmatpush1.msra.mxu0 0.0
  %653 = vmatprep.subr.mxu0 0.0
  %654 = vmatpush1.msra.mxu0 0.0
  %655 = vmatprep.subr.mxu0 0.0
  %656 = vmatpush1.msra.mxu0 0.0
  %657 = vmatprep.subr.mxu0 0.0
  %658 = vmatpush1.msra.mxu0 0.0
  %659 = vmatprep.subr.mxu0 0.0
  %660 = vmatpush1.msra.mxu0 0.0
  %661 = vmatprep.subr.mxu0 0.0
  %662 = vmatpush1.msra.mxu0 0.0
  %663 = vmatprep.mubr.f32.mxu0 0.0
  %v664 = vand.u32 %v55, 4294901760
  %v665 = vsub.f32 %v55, %v664
  %v666 = vand.u32 %v665, 4294901760
  %667 = vmatmul.mubr.f32.gmra.mrb[0].mxu0 %v666
  %v668 = vpop.f32.mrb[0].mxu0
  %v669 = vadd.f32 %v523, %v668
  %v670 = vpop.f32.mrb[0].mxu0
  %671 = vmatprep.mubr.f32.mxu0 0.0
  %v672 = vand.u32 %v58, 4294901760
  %v673 = vsub.f32 %v58, %v672
  %v674 = vand.u32 %v673, 4294901760
  %675 = vmatmul.mubr.f32.gmra.mrb[0].mxu0 %v674
  %v676 = vpop.f32.mrb[0].mxu0
  %v677 = vadd.f32 %v530, %v676
  %v678 = vpop.f32.mrb[0].mxu0
  %679 = vmatprep.mubr.f32.mxu0 0.0
  %v680 = vand.u32 %v61, 4294901760
  %v681 = vsub.f32 %v61, %v680
  %v682 = vand.u32 %v681, 4294901760
  %683 = vmatmul.mubr.f32.gmra.mrb[0].mxu0 %v682
  %v684 = vpop.f32.mrb[0].mxu0
  %v685 = vadd.f32 %v537, %v684
  %v686 = vpop.f32.mrb[0].mxu0
  %687 = vmatprep.mubr.f32.mxu0 0.0
  %v688 = vand.u32 %v64, 4294901760
  %v689 = vsub.f32 %v64, %v688
  %v690 = vand.u32 %v689, 4294901760
  %691 = vmatmul.mubr.f32.gmra.mrb[0].mxu0 %v690
  %v692 = vpop.f32.mrb[0].mxu0
  %v693 = vadd.f32 %v544, %v692
  %v694 = vpop.f32.mrb[0].mxu0
  %695 = vmatprep.mubr.f32.mxu0 0.0
  %v696 = vand.u32 %v67, 4294901760
  %v697 = vsub.f32 %v67, %v696
  %v698 = vand.u32 %v697, 4294901760
  %699 = vmatmul.mubr.f32.gmra.mrb[0].mxu0 %v698
  %v700 = vpop.f32.mrb[0].mxu0
  %v701 = vadd.f32 %v551, %v700
  %v702 = vpop.f32.mrb[0].mxu0
  %703 = vmatprep.mubr.f32.mxu0 0.0
  %v704 = vand.u32 %v70, 4294901760
  %v705 = vsub.f32 %v70, %v704
  %v706 = vand.u32 %v705, 4294901760
  %707 = vmatmul.mubr.f32.gmra.mrb[0].mxu0 %v706
  %v708 = vpop.f32.mrb[0].mxu0
  %v709 = vadd.f32 %v558, %v708
  %v710 = vpop.f32.mrb[0].mxu0
  %711 = vmatprep.mubr.f32.mxu0 0.0
  %v712 = vand.u32 %v73, 4294901760
  %v713 = vsub.f32 %v73, %v712
  %v714 = vand.u32 %v713, 4294901760
  %715 = vmatmul.mubr.f32.gmra.mrb[0].mxu0 %v714
  %v716 = vpop.f32.mrb[0].mxu0
  %v717 = vadd.f32 %v565, %v716
  %v718 = vpop.f32.mrb[0].mxu0
  %719 = vmatprep.mubr.f32.mxu0 0.0
  %v720 = vand.u32 %v76, 4294901760
  %v721 = vsub.f32 %v76, %v720
  %v722 = vand.u32 %v721, 4294901760
  %723 = vmatmul.mubr.f32.gmra.mrb[0].mxu0 %v722
  %v724 = vpop.f32.mrb[0].mxu0
  %v725 = vadd.f32 %v572, %v724
  %v726 = vpop.f32.mrb[0].mxu0
  %727 = vmatprep.mubr.f32.mxu0 0.0
  %v728 = vand.u32 %v79, 4294901760
  %v729 = vsub.f32 %v79, %v728
  %v730 = vand.u32 %v729, 4294901760
  %731 = vmatmul.mubr.f32.gmra.mrb[0].mxu0 %v730
  %v732 = vpop.f32.mrb[0].mxu0
  %v733 = vadd.f32 %v579, %v732
  %v734 = vpop.f32.mrb[0].mxu0
  %735 = vmatprep.mubr.f32.mxu0 0.0
  %v736 = vand.u32 %v82, 4294901760
  %v737 = vsub.f32 %v82, %v736
  %v738 = vand.u32 %v737, 4294901760
  %739 = vmatmul.mubr.f32.gmra.mrb[0].mxu0 %v738
  %v740 = vpop.f32.mrb[0].mxu0
  %v741 = vadd.f32 %v586, %v740
  %v742 = vpop.f32.mrb[0].mxu0
  %743 = vdwg.mxu0
  %744 = vmatprep.subr.mxu0 0.0
  %v745 = vand.u32 %v17, 4294901760
  %v746 = vsub.f32 %v17, %v745
  %v747 = vand.u32 %v746, 4294901760
  %748 = vmatpush1.msra.mxu0 %v747
  %749 = vmatprep.subr.mxu0 0.0
  %v750 = vand.u32 %v18, 4294901760
  %v751 = vsub.f32 %v18, %v750
  %v752 = vand.u32 %v751, 4294901760
  %753 = vmatpush1.msra.mxu0 %v752
  %754 = vmatprep.subr.mxu0 0.0
  %v755 = vand.u32 %v19, 4294901760
  %v756 = vsub.f32 %v19, %v755
  %v757 = vand.u32 %v756, 4294901760
  %758 = vmatpush1.msra.mxu0 %v757
  %759 = vmatprep.subr.mxu0 0.0
  %v760 = vand.u32 %v20, 4294901760
  %v761 = vsub.f32 %v20, %v760
  %v762 = vand.u32 %v761, 4294901760
  %763 = vmatpush1.msra.mxu0 %v762
  %764 = vmatprep.subr.mxu0 0.0
  %v765 = vand.u32 %v47, 4294901760
  %v766 = vsub.f32 %v47, %v765
  %v767 = vand.u32 %v766, 4294901760
  %768 = vmatpush1.msra.mxu0 %v767
  %769 = vmatprep.subr.mxu0 0.0
  %v770 = vand.u32 %v48, 4294901760
  %v771 = vsub.f32 %v48, %v770
  %v772 = vand.u32 %v771, 4294901760
  %773 = vmatpush1.msra.mxu0 %v772
  %774 = vmatprep.subr.mxu0 0.0
  %v775 = vand.u32 %v49, 4294901760
  %v776 = vsub.f32 %v49, %v775
  %v777 = vand.u32 %v776, 4294901760
  %778 = vmatpush1.msra.mxu0 %v777
  %779 = vmatprep.subr.mxu0 0.0
  %v780 = vand.u32 %v50, 4294901760
  %v781 = vsub.f32 %v50, %v780
  %v782 = vand.u32 %v781, 4294901760
  %783 = vmatpush1.msra.mxu0 %v782
  %784 = vmatprep.subr.mxu0 0.0
  %v785 = vand.u32 %v51, 4294901760
  %v786 = vsub.f32 %v51, %v785
  %v787 = vand.u32 %v786, 4294901760
  %788 = vmatpush1.msra.mxu0 %v787
  %789 = vmatprep.subr.mxu0 0.0
  %v790 = vand.u32 %v52, 4294901760
  %v791 = vsub.f32 %v52, %v790
  %v792 = vand.u32 %v791, 4294901760
  %793 = vmatpush1.msra.mxu0 %v792
  %794 = vmatprep.subr.mxu0 0.0
  %795 = vmatpush1.msra.mxu0 0.0
  %796 = vmatprep.subr.mxu0 0.0
  %797 = vmatpush1.msra.mxu0 0.0
  %798 = vmatprep.subr.mxu0 0.0
  %799 = vmatpush1.msra.mxu0 0.0
  %800 = vmatprep.subr.mxu0 0.0
  %801 = vmatpush1.msra.mxu0 0.0
  %802 = vmatprep.subr.mxu0 0.0
  %803 = vmatpush1.msra.mxu0 0.0
  %804 = vmatprep.subr.mxu0 0.0
  %805 = vmatpush1.msra.mxu0 0.0
  %806 = vmatprep.subr.mxu0 0.0
  %807 = vmatpush1.msra.mxu0 0.0
  %808 = vmatprep.subr.mxu0 0.0
  %809 = vmatpush1.msra.mxu0 0.0
  %810 = vmatprep.subr.mxu0 0.0
  %811 = vmatpush1.msra.mxu0 0.0
  %812 = vmatprep.subr.mxu0 0.0
  %813 = vmatpush1.msra.mxu0 0.0
  %814 = vmatprep.subr.mxu0 0.0
  %815 = vmatpush1.msra.mxu0 0.0
  %816 = vmatprep.subr.mxu0 0.0
  %817 = vmatpush1.msra.mxu0 0.0
  %818 = vmatprep.subr.mxu0 0.0
  %819 = vmatpush1.msra.mxu0 0.0
  %820 = vmatprep.subr.mxu0 0.0
  %821 = vmatpush1.msra.mxu0 0.0
  %822 = vmatprep.subr.mxu0 0.0
  %823 = vmatpush1.msra.mxu0 0.0
  %824 = vmatprep.subr.mxu0 0.0
  %825 = vmatpush1.msra.mxu0 0.0
  %826 = vmatprep.subr.mxu0 0.0
  %827 = vmatpush1.msra.mxu0 0.0
  %828 = vmatprep.subr.mxu0 0.0
  %829 = vmatpush1.msra.mxu0 0.0
  %830 = vmatprep.subr.mxu0 0.0
  %831 = vmatpush1.msra.mxu0 0.0
  %832 = vmatprep.subr.mxu0 0.0
  %833 = vmatpush1.msra.mxu0 0.0
  %834 = vmatprep.subr.mxu0 0.0
  %835 = vmatpush1.msra.mxu0 0.0
  %836 = vmatprep.subr.mxu0 0.0
  %837 = vmatpush1.msra.mxu0 0.0
  %838 = vmatprep.mubr.f32.mxu0 0.0
  %v839 = vand.u32 %v55, 4294901760
  %840 = vmatmul.mubr.f32.gmra.mrb[0].mxu0 %v839
  %v841 = vpop.f32.mrb[0].mxu0
  %v842 = vadd.f32 %v669, %v841
  %v843 = vpop.f32.mrb[0].mxu0
  %844 = vmatprep.mubr.f32.mxu0 0.0
  %v845 = vand.u32 %v58, 4294901760
  %846 = vmatmul.mubr.f32.gmra.mrb[0].mxu0 %v845
  %v847 = vpop.f32.mrb[0].mxu0
  %v848 = vadd.f32 %v677, %v847
  %v849 = vpop.f32.mrb[0].mxu0
  %850 = vmatprep.mubr.f32.mxu0 0.0
  %v851 = vand.u32 %v61, 4294901760
  %852 = vmatmul.mubr.f32.gmra.mrb[0].mxu0 %v851
  %v853 = vpop.f32.mrb[0].mxu0
  %v854 = vadd.f32 %v685, %v853
  %v855 = vpop.f32.mrb[0].mxu0
  %856 = vmatprep.mubr.f32.mxu0 0.0
  %v857 = vand.u32 %v64, 4294901760
  %858 = vmatmul.mubr.f32.gmra.mrb[0].mxu0 %v857
  %v859 = vpop.f32.mrb[0].mxu0
  %v860 = vadd.f32 %v693, %v859
  %v861 = vpop.f32.mrb[0].mxu0
  %862 = vmatprep.mubr.f32.mxu0 0.0
  %v863 = vand.u32 %v67, 4294901760
  %864 = vmatmul.mubr.f32.gmra.mrb[0].mxu0 %v863
  %v865 = vpop.f32.mrb[0].mxu0
  %v866 = vadd.f32 %v701, %v865
  %v867 = vpop.f32.mrb[0].mxu0
  %868 = vmatprep.mubr.f32.mxu0 0.0
  %v869 = vand.u32 %v70, 4294901760
  %870 = vmatmul.mubr.f32.gmra.mrb[0].mxu0 %v869
  %v871 = vpop.f32.mrb[0].mxu0
  %v872 = vadd.f32 %v709, %v871
  %v873 = vpop.f32.mrb[0].mxu0
  %874 = vmatprep.mubr.f32.mxu0 0.0
  %v875 = vand.u32 %v73, 4294901760
  %876 = vmatmul.mubr.f32.gmra.mrb[0].mxu0 %v875
  %v877 = vpop.f32.mrb[0].mxu0
  %v878 = vadd.f32 %v717, %v877
  %v879 = vpop.f32.mrb[0].mxu0
  %880 = vmatprep.mubr.f32.mxu0 0.0
  %v881 = vand.u32 %v76, 4294901760
  %882 = vmatmul.mubr.f32.gmra.mrb[0].mxu0 %v881
  %v883 = vpop.f32.mrb[0].mxu0
  %v884 = vadd.f32 %v725, %v883
  %v885 = vpop.f32.mrb[0].mxu0
  %886 = vmatprep.mubr.f32.mxu0 0.0
  %v887 = vand.u32 %v79, 4294901760
  %888 = vmatmul.mubr.f32.gmra.mrb[0].mxu0 %v887
  %v889 = vpop.f32.mrb[0].mxu0
  %v890 = vadd.f32 %v733, %v889
  %v891 = vpop.f32.mrb[0].mxu0
  %892 = vmatprep.mubr.f32.mxu0 0.0
  %v893 = vand.u32 %v82, 4294901760
  %894 = vmatmul.mubr.f32.gmra.mrb[0].mxu0 %v893
  %v895 = vpop.f32.mrb[0].mxu0
  %v896 = vadd.f32 %v741, %v895
  %v897 = vpop.f32.mrb[0].mxu0
  %898 = vdwg.mxu0
  %899 = vmatprep.subr.mxu0 0.0
  %v900 = vand.u32 %v17, 4294901760
  %901 = vmatpush1.msra.mxu0 %v900
  %902 = vmatprep.subr.mxu0 0.0
  %v903 = vand.u32 %v18, 4294901760
  %904 = vmatpush1.msra.mxu0 %v903
  %905 = vmatprep.subr.mxu0 0.0
  %v906 = vand.u32 %v19, 4294901760
  %907 = vmatpush1.msra.mxu0 %v906
  %908 = vmatprep.subr.mxu0 0.0
  %v909 = vand.u32 %v20, 4294901760
  %910 = vmatpush1.msra.mxu0 %v909
  %911 = vmatprep.subr.mxu0 0.0
  %v912 = vand.u32 %v47, 4294901760
  %913 = vmatpush1.msra.mxu0 %v912
  %914 = vmatprep.subr.mxu0 0.0
  %v915 = vand.u32 %v48, 4294901760
  %916 = vmatpush1.msra.mxu0 %v915
  %917 = vmatprep.subr.mxu0 0.0
  %v918 = vand.u32 %v49, 4294901760
  %919 = vmatpush1.msra.mxu0 %v918
  %920 = vmatprep.subr.mxu0 0.0
  %v921 = vand.u32 %v50, 4294901760
  %922 = vmatpush1.msra.mxu0 %v921
  %923 = vmatprep.subr.mxu0 0.0
  %v924 = vand.u32 %v51, 4294901760
  %925 = vmatpush1.msra.mxu0 %v924
  %926 = vmatprep.subr.mxu0 0.0
  %v927 = vand.u32 %v52, 4294901760
  %928 = vmatpush1.msra.mxu0 %v927
  %929 = vmatprep.subr.mxu0 0.0
  %930 = vmatpush1.msra.mxu0 0.0
  %931 = vmatprep.subr.mxu0 0.0
  %932 = vmatpush1.msra.mxu0 0.0
  %933 = vmatprep.subr.mxu0 0.0
  %934 = vmatpush1.msra.mxu0 0.0
  %935 = vmatprep.subr.mxu0 0.0
  %936 = vmatpush1.msra.mxu0 0.0
  %937 = vmatprep.subr.mxu0 0.0
  %938 = vmatpush1.msra.mxu0 0.0
  %939 = vmatprep.subr.mxu0 0.0
  %940 = vmatpush1.msra.mxu0 0.0
  %941 = vmatprep.subr.mxu0 0.0
  %942 = vmatpush1.msra.mxu0 0.0
  %943 = vmatprep.subr.mxu0 0.0
  %944 = vmatpush1.msra.mxu0 0.0
  %945 = vmatprep.subr.mxu0 0.0
  %946 = vmatpush1.msra.mxu0 0.0
  %947 = vmatprep.subr.mxu0 0.0
  %948 = vmatpush1.msra.mxu0 0.0
  %949 = vmatprep.subr.mxu0 0.0
  %950 = vmatpush1.msra.mxu0 0.0
  %951 = vmatprep.subr.mxu0 0.0
  %952 = vmatpush1.msra.mxu0 0.0
  %953 = vmatprep.subr.mxu0 0.0
  %954 = vmatpush1.msra.mxu0 0.0
  %955 = vmatprep.subr.mxu0 0.0
  %956 = vmatpush1.msra.mxu0 0.0
  %957 = vmatprep.subr.mxu0 0.0
  %958 = vmatpush1.msra.mxu0 0.0
  %959 = vmatprep.subr.mxu0 0.0
  %960 = vmatpush1.msra.mxu0 0.0
  %961 = vmatprep.subr.mxu0 0.0
  %962 = vmatpush1.msra.mxu0 0.0
  %963 = vmatprep.subr.mxu0 0.0
  %964 = vmatpush1.msra.mxu0 0.0
  %965 = vmatprep.subr.mxu0 0.0
  %966 = vmatpush1.msra.mxu0 0.0
  %967 = vmatprep.subr.mxu0 0.0
  %968 = vmatpush1.msra.mxu0 0.0
  %969 = vmatprep.subr.mxu0 0.0
  %970 = vmatpush1.msra.mxu0 0.0
  %971 = vmatprep.subr.mxu0 0.0
  %972 = vmatpush1.msra.mxu0 0.0
  %973 = vmatprep.mubr.f32.mxu0 0.0
  %v974 = vand.u32 %v55, 4294901760
  %975 = vmatmul.mubr.f32.gmra.mrb[0].mxu0 %v974
  %v976 = vpop.f32.mrb[0].mxu0
  %v977 = vadd.f32 %v842, %v976
  %v978 = vpop.f32.mrb[0].mxu0
  %979 = vmatprep.mubr.f32.mxu0 0.0
  %v980 = vand.u32 %v58, 4294901760
  %981 = vmatmul.mubr.f32.gmra.mrb[0].mxu0 %v980
  %v982 = vpop.f32.mrb[0].mxu0
  %v983 = vadd.f32 %v848, %v982
  %v984 = vpop.f32.mrb[0].mxu0
  %985 = vmatprep.mubr.f32.mxu0 0.0
  %v986 = vand.u32 %v61, 4294901760
  %987 = vmatmul.mubr.f32.gmra.mrb[0].mxu0 %v986
  %v988 = vpop.f32.mrb[0].mxu0
  %v989 = vadd.f32 %v854, %v988
  %v990 = vpop.f32.mrb[0].mxu0
  %991 = vmatprep.mubr.f32.mxu0 0.0
  %v992 = vand.u32 %v64, 4294901760
  %993 = vmatmul.mubr.f32.gmra.mrb[0].mxu0 %v992
  %v994 = vpop.f32.mrb[0].mxu0
  %v995 = vadd.f32 %v860, %v994
  %v996 = vpop.f32.mrb[0].mxu0
  %997 = vmatprep.mubr.f32.mxu0 0.0
  %v998 = vand.u32 %v67, 4294901760
  %999 = vmatmul.mubr.f32.gmra.mrb[0].mxu0 %v998
  %v1000 = vpop.f32.mrb[0].mxu0
  %v1001 = vadd.f32 %v866, %v1000
  %v1002 = vpop.f32.mrb[0].mxu0
  %1003 = vmatprep.mubr.f32.mxu0 0.0
  %v1004 = vand.u32 %v70, 4294901760
  %1005 = vmatmul.mubr.f32.gmra.mrb[0].mxu0 %v1004
  %v1006 = vpop.f32.mrb[0].mxu0
  %v1007 = vadd.f32 %v872, %v1006
  %v1008 = vpop.f32.mrb[0].mxu0
  %1009 = vmatprep.mubr.f32.mxu0 0.0
  %v1010 = vand.u32 %v73, 4294901760
  %1011 = vmatmul.mubr.f32.gmra.mrb[0].mxu0 %v1010
  %v1012 = vpop.f32.mrb[0].mxu0
  %v1013 = vadd.f32 %v878, %v1012
  %v1014 = vpop.f32.mrb[0].mxu0
  %1015 = vmatprep.mubr.f32.mxu0 0.0
  %v1016 = vand.u32 %v76, 4294901760
  %1017 = vmatmul.mubr.f32.gmra.mrb[0].mxu0 %v1016
  %v1018 = vpop.f32.mrb[0].mxu0
  %v1019 = vadd.f32 %v884, %v1018
  %v1020 = vpop.f32.mrb[0].mxu0
  %1021 = vmatprep.mubr.f32.mxu0 0.0
  %v1022 = vand.u32 %v79, 4294901760
  %1023 = vmatmul.mubr.f32.gmra.mrb[0].mxu0 %v1022
  %v1024 = vpop.f32.mrb[0].mxu0
  %v1025 = vadd.f32 %v890, %v1024
  %v1026 = vpop.f32.mrb[0].mxu0
  %1027 = vmatprep.mubr.f32.mxu0 0.0
  %v1028 = vand.u32 %v82, 4294901760
  %1029 = vmatmul.mubr.f32.gmra.mrb[0].mxu0 %v1028
  %v1030 = vpop.f32.mrb[0].mxu0
  %v1031 = vadd.f32 %v896, %v1030
  %v1032 = vpop.f32.mrb[0].mxu0
  %1033 = vdwg.mxu0
  %1034 = vmatprep.subr.mxu0 0.0
  %v1035 = vand.u32 %v31, 4294901760
  %1036 = vmatpush1.msra.mxu0 %v1035
  %1037 = vmatprep.subr.mxu0 0.0
  %v1038 = vand.u32 %v32, 4294901760
  %1039 = vmatpush1.msra.mxu0 %v1038
  %1040 = vmatprep.subr.mxu0 0.0
  %v1041 = vand.u32 %v33, 4294901760
  %1042 = vmatpush1.msra.mxu0 %v1041
  %1043 = vmatprep.subr.mxu0 0.0
  %v1044 = vand.u32 %v34, 4294901760
  %1045 = vmatpush1.msra.mxu0 %v1044
  %1046 = vmatprep.subr.mxu0 0.0
  %v1047 = vand.u32 %v35, 4294901760
  %1048 = vmatpush1.msra.mxu0 %v1047
  %1049 = vmatprep.subr.mxu0 0.0
  %v1050 = vand.u32 %v36, 4294901760
  %1051 = vmatpush1.msra.mxu0 %v1050
  %1052 = vmatprep.subr.mxu0 0.0
  %v1053 = vand.u32 %v37, 4294901760
  %1054 = vmatpush1.msra.mxu0 %v1053
  %1055 = vmatprep.subr.mxu0 0.0
  %v1056 = vand.u32 %v38, 4294901760
  %1057 = vmatpush1.msra.mxu0 %v1056
  %1058 = vmatprep.subr.mxu0 0.0
  %v1059 = vand.u32 %v39, 4294901760
  %1060 = vmatpush1.msra.mxu0 %v1059
  %1061 = vmatprep.subr.mxu0 0.0
  %v1062 = vand.u32 %v40, 4294901760
  %1063 = vmatpush1.msra.mxu0 %v1062
  %1064 = vmatprep.subr.mxu0 0.0
  %v1065 = vand.u32 %v41, 4294901760
  %1066 = vmatpush1.msra.mxu0 %v1065
  %1067 = vmatprep.subr.mxu0 0.0
  %v1068 = vand.u32 %v42, 4294901760
  %1069 = vmatpush1.msra.mxu0 %v1068
  %1070 = vmatprep.subr.mxu0 0.0
  %v1071 = vand.u32 %v43, 4294901760
  %1072 = vmatpush1.msra.mxu0 %v1071
  %1073 = vmatprep.subr.mxu0 0.0
  %v1074 = vand.u32 %v44, 4294901760
  %1075 = vmatpush1.msra.mxu0 %v1074
  %1076 = vmatprep.subr.mxu0 0.0
  %v1077 = vand.u32 %v45, 4294901760
  %1078 = vmatpush1.msra.mxu0 %v1077
  %1079 = vmatprep.subr.mxu0 0.0
  %v1080 = vand.u32 %v46, 4294901760
  %1081 = vmatpush1.msra.mxu0 %v1080
  %1082 = vmatprep.subr.mxu0 0.0
  %1083 = vmatpush1.msra.mxu0 0.0
  %1084 = vmatprep.subr.mxu0 0.0
  %1085 = vmatpush1.msra.mxu0 0.0
  %1086 = vmatprep.subr.mxu0 0.0
  %1087 = vmatpush1.msra.mxu0 0.0
  %1088 = vmatprep.subr.mxu0 0.0
  %1089 = vmatpush1.msra.mxu0 0.0
  %1090 = vmatprep.subr.mxu0 0.0
  %1091 = vmatpush1.msra.mxu0 0.0
  %1092 = vmatprep.subr.mxu0 0.0
  %1093 = vmatpush1.msra.mxu0 0.0
  %1094 = vmatprep.subr.mxu0 0.0
  %1095 = vmatpush1.msra.mxu0 0.0
  %1096 = vmatprep.subr.mxu0 0.0
  %1097 = vmatpush1.msra.mxu0 0.0
  %1098 = vmatprep.subr.mxu0 0.0
  %1099 = vmatpush1.msra.mxu0 0.0
  %1100 = vmatprep.subr.mxu0 0.0
  %1101 = vmatpush1.msra.mxu0 0.0
  %1102 = vmatprep.subr.mxu0 0.0
  %1103 = vmatpush1.msra.mxu0 0.0
  %1104 = vmatprep.subr.mxu0 0.0
  %1105 = vmatpush1.msra.mxu0 0.0
  %1106 = vmatprep.subr.mxu0 0.0
  %1107 = vmatpush1.msra.mxu0 0.0
  %1108 = vmatprep.subr.mxu0 0.0
  %1109 = vmatpush1.msra.mxu0 0.0
  %1110 = vmatprep.subr.mxu0 0.0
  %1111 = vmatpush1.msra.mxu0 0.0
  %1112 = vmatprep.subr.mxu0 0.0
  %1113 = vmatpush1.msra.mxu0 0.0
  %1114 = vmatprep.mubr.f32.mxu0 0.0
  %v1115 = vand.u32 %v977, 4294901760
  %v1116 = vsub.f32 %v977, %v1115
  %v1117 = vand.u32 %v1116, 4294901760
  %v1118 = vsub.f32 %v1116, %v1117
  %v1119 = vand.u32 %v1118, 4294901760
  %1120 = vmatmul.mubr.f32.gmra.mrb[0].mxu0 %v1119
  %v1121 = vpop.f32.mrb[0].mxu0
  %v1122 = vadd.f32 0.0, %v1121
  %v1123 = vpop.f32.mrb[0].mxu0
  %1124 = vmatprep.mubr.f32.mxu0 0.0
  %v1125 = vand.u32 %v983, 4294901760
  %v1126 = vsub.f32 %v983, %v1125
  %v1127 = vand.u32 %v1126, 4294901760
  %v1128 = vsub.f32 %v1126, %v1127
  %v1129 = vand.u32 %v1128, 4294901760
  %1130 = vmatmul.mubr.f32.gmra.mrb[0].mxu0 %v1129
  %v1131 = vpop.f32.mrb[0].mxu0
  %v1132 = vadd.f32 0.0, %v1131
  %v1133 = vpop.f32.mrb[0].mxu0
  %1134 = vmatprep.mubr.f32.mxu0 0.0
  %v1135 = vand.u32 %v989, 4294901760
  %v1136 = vsub.f32 %v989, %v1135
  %v1137 = vand.u32 %v1136, 4294901760
  %v1138 = vsub.f32 %v1136, %v1137
  %v1139 = vand.u32 %v1138, 4294901760
  %1140 = vmatmul.mubr.f32.gmra.mrb[0].mxu0 %v1139
  %v1141 = vpop.f32.mrb[0].mxu0
  %v1142 = vadd.f32 0.0, %v1141
  %v1143 = vpop.f32.mrb[0].mxu0
  %1144 = vmatprep.mubr.f32.mxu0 0.0
  %v1145 = vand.u32 %v995, 4294901760
  %v1146 = vsub.f32 %v995, %v1145
  %v1147 = vand.u32 %v1146, 4294901760
  %v1148 = vsub.f32 %v1146, %v1147
  %v1149 = vand.u32 %v1148, 4294901760
  %1150 = vmatmul.mubr.f32.gmra.mrb[0].mxu0 %v1149
  %v1151 = vpop.f32.mrb[0].mxu0
  %v1152 = vadd.f32 0.0, %v1151
  %v1153 = vpop.f32.mrb[0].mxu0
  %1154 = vmatprep.mubr.f32.mxu0 0.0
  %v1155 = vand.u32 %v1001, 4294901760
  %v1156 = vsub.f32 %v1001, %v1155
  %v1157 = vand.u32 %v1156, 4294901760
  %v1158 = vsub.f32 %v1156, %v1157
  %v1159 = vand.u32 %v1158, 4294901760
  %1160 = vmatmul.mubr.f32.gmra.mrb[0].mxu0 %v1159
  %v1161 = vpop.f32.mrb[0].mxu0
  %v1162 = vadd.f32 0.0, %v1161
  %v1163 = vpop.f32.mrb[0].mxu0
  %1164 = vmatprep.mubr.f32.mxu0 0.0
  %v1165 = vand.u32 %v1007, 4294901760
  %v1166 = vsub.f32 %v1007, %v1165
  %v1167 = vand.u32 %v1166, 4294901760
  %v1168 = vsub.f32 %v1166, %v1167
  %v1169 = vand.u32 %v1168, 4294901760
  %1170 = vmatmul.mubr.f32.gmra.mrb[0].mxu0 %v1169
  %v1171 = vpop.f32.mrb[0].mxu0
  %v1172 = vadd.f32 0.0, %v1171
  %v1173 = vpop.f32.mrb[0].mxu0
  %1174 = vmatprep.mubr.f32.mxu0 0.0
  %v1175 = vand.u32 %v1013, 4294901760
  %v1176 = vsub.f32 %v1013, %v1175
  %v1177 = vand.u32 %v1176, 4294901760
  %v1178 = vsub.f32 %v1176, %v1177
  %v1179 = vand.u32 %v1178, 4294901760
  %1180 = vmatmul.mubr.f32.gmra.mrb[0].mxu0 %v1179
  %v1181 = vpop.f32.mrb[0].mxu0
  %v1182 = vadd.f32 0.0, %v1181
  %v1183 = vpop.f32.mrb[0].mxu0
  %1184 = vmatprep.mubr.f32.mxu0 0.0
  %v1185 = vand.u32 %v1019, 4294901760
  %v1186 = vsub.f32 %v1019, %v1185
  %v1187 = vand.u32 %v1186, 4294901760
  %v1188 = vsub.f32 %v1186, %v1187
  %v1189 = vand.u32 %v1188, 4294901760
  %1190 = vmatmul.mubr.f32.gmra.mrb[0].mxu0 %v1189
  %v1191 = vpop.f32.mrb[0].mxu0
  %v1192 = vadd.f32 0.0, %v1191
  %v1193 = vpop.f32.mrb[0].mxu0
  %1194 = vmatprep.mubr.f32.mxu0 0.0
  %v1195 = vand.u32 %v1025, 4294901760
  %v1196 = vsub.f32 %v1025, %v1195
  %v1197 = vand.u32 %v1196, 4294901760
  %v1198 = vsub.f32 %v1196, %v1197
  %v1199 = vand.u32 %v1198, 4294901760
  %1200 = vmatmul.mubr.f32.gmra.mrb[0].mxu0 %v1199
  %v1201 = vpop.f32.mrb[0].mxu0
  %v1202 = vadd.f32 0.0, %v1201
  %v1203 = vpop.f32.mrb[0].mxu0
  %1204 = vmatprep.mubr.f32.mxu0 0.0
  %v1205 = vand.u32 %v1031, 4294901760
  %v1206 = vsub.f32 %v1031, %v1205
  %v1207 = vand.u32 %v1206, 4294901760
  %v1208 = vsub.f32 %v1206, %v1207
  %v1209 = vand.u32 %v1208, 4294901760
  %1210 = vmatmul.mubr.f32.gmra.mrb[0].mxu0 %v1209
  %v1211 = vpop.f32.mrb[0].mxu0
  %v1212 = vadd.f32 0.0, %v1211
  %v1213 = vpop.f32.mrb[0].mxu0
  %1214 = vdwg.mxu0
  %1215 = vmatprep.subr.mxu0 0.0
  %v1216 = vand.u32 %v31, 4294901760
  %v1217 = vsub.f32 %v31, %v1216
  %v1218 = vand.u32 %v1217, 4294901760
  %v1219 = vsub.f32 %v1217, %v1218
  %v1220 = vand.u32 %v1219, 4294901760
  %1221 = vmatpush1.msra.mxu0 %v1220
  %1222 = vmatprep.subr.mxu0 0.0
  %v1223 = vand.u32 %v32, 4294901760
  %v1224 = vsub.f32 %v32, %v1223
  %v1225 = vand.u32 %v1224, 4294901760
  %v1226 = vsub.f32 %v1224, %v1225
  %v1227 = vand.u32 %v1226, 4294901760
  %1228 = vmatpush1.msra.mxu0 %v1227
  %1229 = vmatprep.subr.mxu0 0.0
  %v1230 = vand.u32 %v33, 4294901760
  %v1231 = vsub.f32 %v33, %v1230
  %v1232 = vand.u32 %v1231, 4294901760
  %v1233 = vsub.f32 %v1231, %v1232
  %v1234 = vand.u32 %v1233, 4294901760
  %1235 = vmatpush1.msra.mxu0 %v1234
  %1236 = vmatprep.subr.mxu0 0.0
  %v1237 = vand.u32 %v34, 4294901760
  %v1238 = vsub.f32 %v34, %v1237
  %v1239 = vand.u32 %v1238, 4294901760
  %v1240 = vsub.f32 %v1238, %v1239
  %v1241 = vand.u32 %v1240, 4294901760
  %1242 = vmatpush1.msra.mxu0 %v1241
  %1243 = vmatprep.subr.mxu0 0.0
  %v1244 = vand.u32 %v35, 4294901760
  %v1245 = vsub.f32 %v35, %v1244
  %v1246 = vand.u32 %v1245, 4294901760
  %v1247 = vsub.f32 %v1245, %v1246
  %v1248 = vand.u32 %v1247, 4294901760
  %1249 = vmatpush1.msra.mxu0 %v1248
  %1250 = vmatprep.subr.mxu0 0.0
  %v1251 = vand.u32 %v36, 4294901760
  %v1252 = vsub.f32 %v36, %v1251
  %v1253 = vand.u32 %v1252, 4294901760
  %v1254 = vsub.f32 %v1252, %v1253
  %v1255 = vand.u32 %v1254, 4294901760
  %1256 = vmatpush1.msra.mxu0 %v1255
  %1257 = vmatprep.subr.mxu0 0.0
  %v1258 = vand.u32 %v37, 4294901760
  %v1259 = vsub.f32 %v37, %v1258
  %v1260 = vand.u32 %v1259, 4294901760
  %v1261 = vsub.f32 %v1259, %v1260
  %v1262 = vand.u32 %v1261, 4294901760
  %1263 = vmatpush1.msra.mxu0 %v1262
  %1264 = vmatprep.subr.mxu0 0.0
  %v1265 = vand.u32 %v38, 4294901760
  %v1266 = vsub.f32 %v38, %v1265
  %v1267 = vand.u32 %v1266, 4294901760
  %v1268 = vsub.f32 %v1266, %v1267
  %v1269 = vand.u32 %v1268, 4294901760
  %1270 = vmatpush1.msra.mxu0 %v1269
  %1271 = vmatprep.subr.mxu0 0.0
  %v1272 = vand.u32 %v39, 4294901760
  %v1273 = vsub.f32 %v39, %v1272
  %v1274 = vand.u32 %v1273, 4294901760
  %v1275 = vsub.f32 %v1273, %v1274
  %v1276 = vand.u32 %v1275, 4294901760
  %1277 = vmatpush1.msra.mxu0 %v1276
  %1278 = vmatprep.subr.mxu0 0.0
  %v1279 = vand.u32 %v40, 4294901760
  %v1280 = vsub.f32 %v40, %v1279
  %v1281 = vand.u32 %v1280, 4294901760
  %v1282 = vsub.f32 %v1280, %v1281
  %v1283 = vand.u32 %v1282, 4294901760
  %1284 = vmatpush1.msra.mxu0 %v1283
  %1285 = vmatprep.subr.mxu0 0.0
  %v1286 = vand.u32 %v41, 4294901760
  %v1287 = vsub.f32 %v41, %v1286
  %v1288 = vand.u32 %v1287, 4294901760
  %v1289 = vsub.f32 %v1287, %v1288
  %v1290 = vand.u32 %v1289, 4294901760
  %1291 = vmatpush1.msra.mxu0 %v1290
  %1292 = vmatprep.subr.mxu0 0.0
  %v1293 = vand.u32 %v42, 4294901760
  %v1294 = vsub.f32 %v42, %v1293
  %v1295 = vand.u32 %v1294, 4294901760
  %v1296 = vsub.f32 %v1294, %v1295
  %v1297 = vand.u32 %v1296, 4294901760
  %1298 = vmatpush1.msra.mxu0 %v1297
  %1299 = vmatprep.subr.mxu0 0.0
  %v1300 = vand.u32 %v43, 4294901760
  %v1301 = vsub.f32 %v43, %v1300
  %v1302 = vand.u32 %v1301, 4294901760
  %v1303 = vsub.f32 %v1301, %v1302
  %v1304 = vand.u32 %v1303, 4294901760
  %1305 = vmatpush1.msra.mxu0 %v1304
  %1306 = vmatprep.subr.mxu0 0.0
  %v1307 = vand.u32 %v44, 4294901760
  %v1308 = vsub.f32 %v44, %v1307
  %v1309 = vand.u32 %v1308, 4294901760
  %v1310 = vsub.f32 %v1308, %v1309
  %v1311 = vand.u32 %v1310, 4294901760
  %1312 = vmatpush1.msra.mxu0 %v1311
  %1313 = vmatprep.subr.mxu0 0.0
  %v1314 = vand.u32 %v45, 4294901760
  %v1315 = vsub.f32 %v45, %v1314
  %v1316 = vand.u32 %v1315, 4294901760
  %v1317 = vsub.f32 %v1315, %v1316
  %v1318 = vand.u32 %v1317, 4294901760
  %1319 = vmatpush1.msra.mxu0 %v1318
  %1320 = vmatprep.subr.mxu0 0.0
  %v1321 = vand.u32 %v46, 4294901760
  %v1322 = vsub.f32 %v46, %v1321
  %v1323 = vand.u32 %v1322, 4294901760
  %v1324 = vsub.f32 %v1322, %v1323
  %v1325 = vand.u32 %v1324, 4294901760
  %1326 = vmatpush1.msra.mxu0 %v1325
  %1327 = vmatprep.subr.mxu0 0.0
  %1328 = vmatpush1.msra.mxu0 0.0
  %1329 = vmatprep.subr.mxu0 0.0
  %1330 = vmatpush1.msra.mxu0 0.0
  %1331 = vmatprep.subr.mxu0 0.0
  %1332 = vmatpush1.msra.mxu0 0.0
  %1333 = vmatprep.subr.mxu0 0.0
  %1334 = vmatpush1.msra.mxu0 0.0
  %1335 = vmatprep.subr.mxu0 0.0
  %1336 = vmatpush1.msra.mxu0 0.0
  %1337 = vmatprep.subr.mxu0 0.0
  %1338 = vmatpush1.msra.mxu0 0.0
  %1339 = vmatprep.subr.mxu0 0.0
  %1340 = vmatpush1.msra.mxu0 0.0
  %1341 = vmatprep.subr.mxu0 0.0
  %1342 = vmatpush1.msra.mxu0 0.0
  %1343 = vmatprep.subr.mxu0 0.0
  %1344 = vmatpush1.msra.mxu0 0.0
  %1345 = vmatprep.subr.mxu0 0.0
  %1346 = vmatpush1.msra.mxu0 0.0
  %1347 = vmatprep.subr.mxu0 0.0
  %1348 = vmatpush1.msra.mxu0 0.0
  %1349 = vmatprep.subr.mxu0 0.0
  %1350 = vmatpush1.msra.mxu0 0.0
  %1351 = vmatprep.subr.mxu0 0.0
  %1352 = vmatpush1.msra.mxu0 0.0
  %1353 = vmatprep.subr.mxu0 0.0
  %1354 = vmatpush1.msra.mxu0 0.0
  %1355 = vmatprep.subr.mxu0 0.0
  %1356 = vmatpush1.msra.mxu0 0.0
  %1357 = vmatprep.subr.mxu0 0.0
  %1358 = vmatpush1.msra.mxu0 0.0
  %1359 = vmatprep.mubr.f32.mxu0 0.0
  %v1360 = vand.u32 %v977, 4294901760
  %1361 = vmatmul.mubr.f32.gmra.mrb[0].mxu0 %v1360
  %v1362 = vpop.f32.mrb[0].mxu0
  %v1363 = vadd.f32 %v1122, %v1362
  %v1364 = vpop.f32.mrb[0].mxu0
  %1365 = vmatprep.mubr.f32.mxu0 0.0
  %v1366 = vand.u32 %v983, 4294901760
  %1367 = vmatmul.mubr.f32.gmra.mrb[0].mxu0 %v1366
  %v1368 = vpop.f32.mrb[0].mxu0
  %v1369 = vadd.f32 %v1132, %v1368
  %v1370 = vpop.f32.mrb[0].mxu0
  %1371 = vmatprep.mubr.f32.mxu0 0.0
  %v1372 = vand.u32 %v989, 4294901760
  %1373 = vmatmul.mubr.f32.gmra.mrb[0].mxu0 %v1372
  %v1374 = vpop.f32.mrb[0].mxu0
  %v1375 = vadd.f32 %v1142, %v1374
  %v1376 = vpop.f32.mrb[0].mxu0
  %1377 = vmatprep.mubr.f32.mxu0 0.0
  %v1378 = vand.u32 %v995, 4294901760
  %1379 = vmatmul.mubr.f32.gmra.mrb[0].mxu0 %v1378
  %v1380 = vpop.f32.mrb[0].mxu0
  %v1381 = vadd.f32 %v1152, %v1380
  %v1382 = vpop.f32.mrb[0].mxu0
  %1383 = vmatprep.mubr.f32.mxu0 0.0
  %v1384 = vand.u32 %v1001, 4294901760
  %1385 = vmatmul.mubr.f32.gmra.mrb[0].mxu0 %v1384
  %v1386 = vpop.f32.mrb[0].mxu0
  %v1387 = vadd.f32 %v1162, %v1386
  %v1388 = vpop.f32.mrb[0].mxu0
  %1389 = vmatprep.mubr.f32.mxu0 0.0
  %v1390 = vand.u32 %v1007, 4294901760
  %1391 = vmatmul.mubr.f32.gmra.mrb[0].mxu0 %v1390
  %v1392 = vpop.f32.mrb[0].mxu0
  %v1393 = vadd.f32 %v1172, %v1392
  %v1394 = vpop.f32.mrb[0].mxu0
  %1395 = vmatprep.mubr.f32.mxu0 0.0
  %v1396 = vand.u32 %v1013, 4294901760
  %1397 = vmatmul.mubr.f32.gmra.mrb[0].mxu0 %v1396
  %v1398 = vpop.f32.mrb[0].mxu0
  %v1399 = vadd.f32 %v1182, %v1398
  %v1400 = vpop.f32.mrb[0].mxu0
  %1401 = vmatprep.mubr.f32.mxu0 0.0
  %v1402 = vand.u32 %v1019, 4294901760
  %1403 = vmatmul.mubr.f32.gmra.mrb[0].mxu0 %v1402
  %v1404 = vpop.f32.mrb[0].mxu0
  %v1405 = vadd.f32 %v1192, %v1404
  %v1406 = vpop.f32.mrb[0].mxu0
  %1407 = vmatprep.mubr.f32.mxu0 0.0
  %v1408 = vand.u32 %v1025, 4294901760
  %1409 = vmatmul.mubr.f32.gmra.mrb[0].mxu0 %v1408
  %v1410 = vpop.f32.mrb[0].mxu0
  %v1411 = vadd.f32 %v1202, %v1410
  %v1412 = vpop.f32.mrb[0].mxu0
  %1413 = vmatprep.mubr.f32.mxu0 0.0
  %v1414 = vand.u32 %v1031, 4294901760
  %1415 = vmatmul.mubr.f32.gmra.mrb[0].mxu0 %v1414
  %v1416 = vpop.f32.mrb[0].mxu0
  %v1417 = vadd.f32 %v1212, %v1416
  %v1418 = vpop.f32.mrb[0].mxu0
  %1419 = vdwg.mxu0
  %1420 = vmatprep.subr.mxu0 0.0
  %v1421 = vand.u32 %v31, 4294901760
  %v1422 = vsub.f32 %v31, %v1421
  %1423 = vmatpush1.msra.mxu0 %v1422
  %1424 = vmatprep.subr.mxu0 0.0
  %v1425 = vand.u32 %v32, 4294901760
  %v1426 = vsub.f32 %v32, %v1425
  %1427 = vmatpush1.msra.mxu0 %v1426
  %1428 = vmatprep.subr.mxu0 0.0
  %v1429 = vand.u32 %v33, 4294901760
  %v1430 = vsub.f32 %v33, %v1429
  %1431 = vmatpush1.msra.mxu0 %v1430
  %1432 = vmatprep.subr.mxu0 0.0
  %v1433 = vand.u32 %v34, 4294901760
  %v1434 = vsub.f32 %v34, %v1433
  %1435 = vmatpush1.msra.mxu0 %v1434
  %1436 = vmatprep.subr.mxu0 0.0
  %v1437 = vand.u32 %v35, 4294901760
  %v1438 = vsub.f32 %v35, %v1437
  %1439 = vmatpush1.msra.mxu0 %v1438
  %1440 = vmatprep.subr.mxu0 0.0
  %v1441 = vand.u32 %v36, 4294901760
  %v1442 = vsub.f32 %v36, %v1441
  %1443 = vmatpush1.msra.mxu0 %v1442
  %1444 = vmatprep.subr.mxu0 0.0
  %v1445 = vand.u32 %v37, 4294901760
  %v1446 = vsub.f32 %v37, %v1445
  %1447 = vmatpush1.msra.mxu0 %v1446
  %1448 = vmatprep.subr.mxu0 0.0
  %v1449 = vand.u32 %v38, 4294901760
  %v1450 = vsub.f32 %v38, %v1449
  %1451 = vmatpush1.msra.mxu0 %v1450
  %1452 = vmatprep.subr.mxu0 0.0
  %v1453 = vand.u32 %v39, 4294901760
  %v1454 = vsub.f32 %v39, %v1453
  %1455 = vmatpush1.msra.mxu0 %v1454
  %1456 = vmatprep.subr.mxu0 0.0
  %v1457 = vand.u32 %v40, 4294901760
  %v1458 = vsub.f32 %v40, %v1457
  %1459 = vmatpush1.msra.mxu0 %v1458
  %1460 = vmatprep.subr.mxu0 0.0
  %v1461 = vand.u32 %v41, 4294901760
  %v1462 = vsub.f32 %v41, %v1461
  %1463 = vmatpush1.msra.mxu0 %v1462
  %1464 = vmatprep.subr.mxu0 0.0
  %v1465 = vand.u32 %v42, 4294901760
  %v1466 = vsub.f32 %v42, %v1465
  %1467 = vmatpush1.msra.mxu0 %v1466
  %1468 = vmatprep.subr.mxu0 0.0
  %v1469 = vand.u32 %v43, 4294901760
  %v1470 = vsub.f32 %v43, %v1469
  %1471 = vmatpush1.msra.mxu0 %v1470
  %1472 = vmatprep.subr.mxu0 0.0
  %v1473 = vand.u32 %v44, 4294901760
  %v1474 = vsub.f32 %v44, %v1473
  %1475 = vmatpush1.msra.mxu0 %v1474
  %1476 = vmatprep.subr.mxu0 0.0
  %v1477 = vand.u32 %v45, 4294901760
  %v1478 = vsub.f32 %v45, %v1477
  %1479 = vmatpush1.msra.mxu0 %v1478
  %1480 = vmatprep.subr.mxu0 0.0
  %v1481 = vand.u32 %v46, 4294901760
  %v1482 = vsub.f32 %v46, %v1481
  %1483 = vmatpush1.msra.mxu0 %v1482
  %1484 = vmatprep.subr.mxu0 0.0
  %1485 = vmatpush1.msra.mxu0 0.0
  %1486 = vmatprep.subr.mxu0 0.0
  %1487 = vmatpush1.msra.mxu0 0.0
  %1488 = vmatprep.subr.mxu0 0.0
  %1489 = vmatpush1.msra.mxu0 0.0
  %1490 = vmatprep.subr.mxu0 0.0
  %1491 = vmatpush1.msra.mxu0 0.0
  %1492 = vmatprep.subr.mxu0 0.0
  %1493 = vmatpush1.msra.mxu0 0.0
  %1494 = vmatprep.subr.mxu0 0.0
  %1495 = vmatpush1.msra.mxu0 0.0
  %1496 = vmatprep.subr.mxu0 0.0
  %1497 = vmatpush1.msra.mxu0 0.0
  %1498 = vmatprep.subr.mxu0 0.0
  %1499 = vmatpush1.msra.mxu0 0.0
  %1500 = vmatprep.subr.mxu0 0.0
  %1501 = vmatpush1.msra.mxu0 0.0
  %1502 = vmatprep.subr.mxu0 0.0
  %1503 = vmatpush1.msra.mxu0 0.0
  %1504 = vmatprep.subr.mxu0 0.0
  %1505 = vmatpush1.msra.mxu0 0.0
  %1506 = vmatprep.subr.mxu0 0.0
  %1507 = vmatpush1.msra.mxu0 0.0
  %1508 = vmatprep.subr.mxu0 0.0
  %1509 = vmatpush1.msra.mxu0 0.0
  %1510 = vmatprep.subr.mxu0 0.0
  %1511 = vmatpush1.msra.mxu0 0.0
  %1512 = vmatprep.subr.mxu0 0.0
  %1513 = vmatpush1.msra.mxu0 0.0
  %1514 = vmatprep.subr.mxu0 0.0
  %1515 = vmatpush1.msra.mxu0 0.0
  %1516 = vmatprep.mubr.f32.mxu0 0.0
  %v1517 = vand.u32 %v977, 4294901760
  %v1518 = vsub.f32 %v977, %v1517
  %1519 = vmatmul.mubr.f32.gmra.mrb[0].mxu0 %v1518
  %v1520 = vpop.f32.mrb[0].mxu0
  %v1521 = vadd.f32 %v1363, %v1520
  %v1522 = vpop.f32.mrb[0].mxu0
  %1523 = vmatprep.mubr.f32.mxu0 0.0
  %v1524 = vand.u32 %v983, 4294901760
  %v1525 = vsub.f32 %v983, %v1524
  %1526 = vmatmul.mubr.f32.gmra.mrb[0].mxu0 %v1525
  %v1527 = vpop.f32.mrb[0].mxu0
  %v1528 = vadd.f32 %v1369, %v1527
  %v1529 = vpop.f32.mrb[0].mxu0
  %1530 = vmatprep.mubr.f32.mxu0 0.0
  %v1531 = vand.u32 %v989, 4294901760
  %v1532 = vsub.f32 %v989, %v1531
  %1533 = vmatmul.mubr.f32.gmra.mrb[0].mxu0 %v1532
  %v1534 = vpop.f32.mrb[0].mxu0
  %v1535 = vadd.f32 %v1375, %v1534
  %v1536 = vpop.f32.mrb[0].mxu0
  %1537 = vmatprep.mubr.f32.mxu0 0.0
  %v1538 = vand.u32 %v995, 4294901760
  %v1539 = vsub.f32 %v995, %v1538
  %1540 = vmatmul.mubr.f32.gmra.mrb[0].mxu0 %v1539
  %v1541 = vpop.f32.mrb[0].mxu0
  %v1542 = vadd.f32 %v1381, %v1541
  %v1543 = vpop.f32.mrb[0].mxu0
  %1544 = vmatprep.mubr.f32.mxu0 0.0
  %v1545 = vand.u32 %v1001, 4294901760
  %v1546 = vsub.f32 %v1001, %v1545
  %1547 = vmatmul.mubr.f32.gmra.mrb[0].mxu0 %v1546
  %v1548 = vpop.f32.mrb[0].mxu0
  %v1549 = vadd.f32 %v1387, %v1548
  %v1550 = vpop.f32.mrb[0].mxu0
  %1551 = vmatprep.mubr.f32.mxu0 0.0
  %v1552 = vand.u32 %v1007, 4294901760
  %v1553 = vsub.f32 %v1007, %v1552
  %1554 = vmatmul.mubr.f32.gmra.mrb[0].mxu0 %v1553
  %v1555 = vpop.f32.mrb[0].mxu0
  %v1556 = vadd.f32 %v1393, %v1555
  %v1557 = vpop.f32.mrb[0].mxu0
  %1558 = vmatprep.mubr.f32.mxu0 0.0
  %v1559 = vand.u32 %v1013, 4294901760
  %v1560 = vsub.f32 %v1013, %v1559
  %1561 = vmatmul.mubr.f32.gmra.mrb[0].mxu0 %v1560
  %v1562 = vpop.f32.mrb[0].mxu0
  %v1563 = vadd.f32 %v1399, %v1562
  %v1564 = vpop.f32.mrb[0].mxu0
  %1565 = vmatprep.mubr.f32.mxu0 0.0
  %v1566 = vand.u32 %v1019, 4294901760
  %v1567 = vsub.f32 %v1019, %v1566
  %1568 = vmatmul.mubr.f32.gmra.mrb[0].mxu0 %v1567
  %v1569 = vpop.f32.mrb[0].mxu0
  %v1570 = vadd.f32 %v1405, %v1569
  %v1571 = vpop.f32.mrb[0].mxu0
  %1572 = vmatprep.mubr.f32.mxu0 0.0
  %v1573 = vand.u32 %v1025, 4294901760
  %v1574 = vsub.f32 %v1025, %v1573
  %1575 = vmatmul.mubr.f32.gmra.mrb[0].mxu0 %v1574
  %v1576 = vpop.f32.mrb[0].mxu0
  %v1577 = vadd.f32 %v1411, %v1576
  %v1578 = vpop.f32.mrb[0].mxu0
  %1579 = vmatprep.mubr.f32.mxu0 0.0
  %v1580 = vand.u32 %v1031, 4294901760
  %v1581 = vsub.f32 %v1031, %v1580
  %1582 = vmatmul.mubr.f32.gmra.mrb[0].mxu0 %v1581
  %v1583 = vpop.f32.mrb[0].mxu0
  %v1584 = vadd.f32 %v1417, %v1583
  %v1585 = vpop.f32.mrb[0].mxu0
  %1586 = vdwg.mxu0
  %1587 = vmatprep.subr.mxu0 0.0
  %v1588 = vand.u32 %v31, 4294901760
  %1589 = vmatpush1.msra.mxu0 %v1588
  %1590 = vmatprep.subr.mxu0 0.0
  %v1591 = vand.u32 %v32, 4294901760
  %1592 = vmatpush1.msra.mxu0 %v1591
  %1593 = vmatprep.subr.mxu0 0.0
  %v1594 = vand.u32 %v33, 4294901760
  %1595 = vmatpush1.msra.mxu0 %v1594
  %1596 = vmatprep.subr.mxu0 0.0
  %v1597 = vand.u32 %v34, 4294901760
  %1598 = vmatpush1.msra.mxu0 %v1597
  %1599 = vmatprep.subr.mxu0 0.0
  %v1600 = vand.u32 %v35, 4294901760
  %1601 = vmatpush1.msra.mxu0 %v1600
  %1602 = vmatprep.subr.mxu0 0.0
  %v1603 = vand.u32 %v36, 4294901760
  %1604 = vmatpush1.msra.mxu0 %v1603
  %1605 = vmatprep.subr.mxu0 0.0
  %v1606 = vand.u32 %v37, 4294901760
  %1607 = vmatpush1.msra.mxu0 %v1606
  %1608 = vmatprep.subr.mxu0 0.0
  %v1609 = vand.u32 %v38, 4294901760
  %1610 = vmatpush1.msra.mxu0 %v1609
  %1611 = vmatprep.subr.mxu0 0.0
  %v1612 = vand.u32 %v39, 4294901760
  %1613 = vmatpush1.msra.mxu0 %v1612
  %1614 = vmatprep.subr.mxu0 0.0
  %v1615 = vand.u32 %v40, 4294901760
  %1616 = vmatpush1.msra.mxu0 %v1615
  %1617 = vmatprep.subr.mxu0 0.0
  %v1618 = vand.u32 %v41, 4294901760
  %1619 = vmatpush1.msra.mxu0 %v1618
  %1620 = vmatprep.subr.mxu0 0.0
  %v1621 = vand.u32 %v42, 4294901760
  %1622 = vmatpush1.msra.mxu0 %v1621
  %1623 = vmatprep.subr.mxu0 0.0
  %v1624 = vand.u32 %v43, 4294901760
  %1625 = vmatpush1.msra.mxu0 %v1624
  %1626 = vmatprep.subr.mxu0 0.0
  %v1627 = vand.u32 %v44, 4294901760
  %1628 = vmatpush1.msra.mxu0 %v1627
  %1629 = vmatprep.subr.mxu0 0.0
  %v1630 = vand.u32 %v45, 4294901760
  %1631 = vmatpush1.msra.mxu0 %v1630
  %1632 = vmatprep.subr.mxu0 0.0
  %v1633 = vand.u32 %v46, 4294901760
  %1634 = vmatpush1.msra.mxu0 %v1633
  %1635 = vmatprep.subr.mxu0 0.0
  %1636 = vmatpush1.msra.mxu0 0.0
  %1637 = vmatprep.subr.mxu0 0.0
  %1638 = vmatpush1.msra.mxu0 0.0
  %1639 = vmatprep.subr.mxu0 0.0
  %1640 = vmatpush1.msra.mxu0 0.0
  %1641 = vmatprep.subr.mxu0 0.0
  %1642 = vmatpush1.msra.mxu0 0.0
  %1643 = vmatprep.subr.mxu0 0.0
  %1644 = vmatpush1.msra.mxu0 0.0
  %1645 = vmatprep.subr.mxu0 0.0
  %1646 = vmatpush1.msra.mxu0 0.0
  %1647 = vmatprep.subr.mxu0 0.0
  %1648 = vmatpush1.msra.mxu0 0.0
  %1649 = vmatprep.subr.mxu0 0.0
  %1650 = vmatpush1.msra.mxu0 0.0
  %1651 = vmatprep.subr.mxu0 0.0
  %1652 = vmatpush1.msra.mxu0 0.0
  %1653 = vmatprep.subr.mxu0 0.0
  %1654 = vmatpush1.msra.mxu0 0.0
  %1655 = vmatprep.subr.mxu0 0.0
  %1656 = vmatpush1.msra.mxu0 0.0
  %1657 = vmatprep.subr.mxu0 0.0
  %1658 = vmatpush1.msra.mxu0 0.0
  %1659 = vmatprep.subr.mxu0 0.0
  %1660 = vmatpush1.msra.mxu0 0.0
  %1661 = vmatprep.subr.mxu0 0.0
  %1662 = vmatpush1.msra.mxu0 0.0
  %1663 = vmatprep.subr.mxu0 0.0
  %1664 = vmatpush1.msra.mxu0 0.0
  %1665 = vmatprep.subr.mxu0 0.0
  %1666 = vmatpush1.msra.mxu0 0.0
  %1667 = vmatprep.mubr.f32.mxu0 0.0
  %v1668 = vand.u32 %v977, 4294901760
  %v1669 = vsub.f32 %v977, %v1668
  %v1670 = vand.u32 %v1669, 4294901760
  %1671 = vmatmul.mubr.f32.gmra.mrb[0].mxu0 %v1670
  %v1672 = vpop.f32.mrb[0].mxu0
  %v1673 = vadd.f32 %v1521, %v1672
  %v1674 = vpop.f32.mrb[0].mxu0
  %1675 = vmatprep.mubr.f32.mxu0 0.0
  %v1676 = vand.u32 %v983, 4294901760
  %v1677 = vsub.f32 %v983, %v1676
  %v1678 = vand.u32 %v1677, 4294901760
  %1679 = vmatmul.mubr.f32.gmra.mrb[0].mxu0 %v1678
  %v1680 = vpop.f32.mrb[0].mxu0
  %v1681 = vadd.f32 %v1528, %v1680
  %v1682 = vpop.f32.mrb[0].mxu0
  %1683 = vmatprep.mubr.f32.mxu0 0.0
  %v1684 = vand.u32 %v989, 4294901760
  %v1685 = vsub.f32 %v989, %v1684
  %v1686 = vand.u32 %v1685, 4294901760
  %1687 = vmatmul.mubr.f32.gmra.mrb[0].mxu0 %v1686
  %v1688 = vpop.f32.mrb[0].mxu0
  %v1689 = vadd.f32 %v1535, %v1688
  %v1690 = vpop.f32.mrb[0].mxu0
  %1691 = vmatprep.mubr.f32.mxu0 0.0
  %v1692 = vand.u32 %v995, 4294901760
  %v1693 = vsub.f32 %v995, %v1692
  %v1694 = vand.u32 %v1693, 4294901760
  %1695 = vmatmul.mubr.f32.gmra.mrb[0].mxu0 %v1694
  %v1696 = vpop.f32.mrb[0].mxu0
  %v1697 = vadd.f32 %v1542, %v1696
  %v1698 = vpop.f32.mrb[0].mxu0
  %1699 = vmatprep.mubr.f32.mxu0 0.0
  %v1700 = vand.u32 %v1001, 4294901760
  %v1701 = vsub.f32 %v1001, %v1700
  %v1702 = vand.u32 %v1701, 4294901760
  %1703 = vmatmul.mubr.f32.gmra.mrb[0].mxu0 %v1702
  %v1704 = vpop.f32.mrb[0].mxu0
  %v1705 = vadd.f32 %v1549, %v1704
  %v1706 = vpop.f32.mrb[0].mxu0
  %1707 = vmatprep.mubr.f32.mxu0 0.0
  %v1708 = vand.u32 %v1007, 4294901760
  %v1709 = vsub.f32 %v1007, %v1708
  %v1710 = vand.u32 %v1709, 4294901760
  %1711 = vmatmul.mubr.f32.gmra.mrb[0].mxu0 %v1710
  %v1712 = vpop.f32.mrb[0].mxu0
  %v1713 = vadd.f32 %v1556, %v1712
  %v1714 = vpop.f32.mrb[0].mxu0
  %1715 = vmatprep.mubr.f32.mxu0 0.0
  %v1716 = vand.u32 %v1013, 4294901760
  %v1717 = vsub.f32 %v1013, %v1716
  %v1718 = vand.u32 %v1717, 4294901760
  %1719 = vmatmul.mubr.f32.gmra.mrb[0].mxu0 %v1718
  %v1720 = vpop.f32.mrb[0].mxu0
  %v1721 = vadd.f32 %v1563, %v1720
  %v1722 = vpop.f32.mrb[0].mxu0
  %1723 = vmatprep.mubr.f32.mxu0 0.0
  %v1724 = vand.u32 %v1019, 4294901760
  %v1725 = vsub.f32 %v1019, %v1724
  %v1726 = vand.u32 %v1725, 4294901760
  %1727 = vmatmul.mubr.f32.gmra.mrb[0].mxu0 %v1726
  %v1728 = vpop.f32.mrb[0].mxu0
  %v1729 = vadd.f32 %v1570, %v1728
  %v1730 = vpop.f32.mrb[0].mxu0
  %1731 = vmatprep.mubr.f32.mxu0 0.0
  %v1732 = vand.u32 %v1025, 4294901760
  %v1733 = vsub.f32 %v1025, %v1732
  %v1734 = vand.u32 %v1733, 4294901760
  %1735 = vmatmul.mubr.f32.gmra.mrb[0].mxu0 %v1734
  %v1736 = vpop.f32.mrb[0].mxu0
  %v1737 = vadd.f32 %v1577, %v1736
  %v1738 = vpop.f32.mrb[0].mxu0
  %1739 = vmatprep.mubr.f32.mxu0 0.0
  %v1740 = vand.u32 %v1031, 4294901760
  %v1741 = vsub.f32 %v1031, %v1740
  %v1742 = vand.u32 %v1741, 4294901760
  %1743 = vmatmul.mubr.f32.gmra.mrb[0].mxu0 %v1742
  %v1744 = vpop.f32.mrb[0].mxu0
  %v1745 = vadd.f32 %v1584, %v1744
  %v1746 = vpop.f32.mrb[0].mxu0
  %1747 = vdwg.mxu0
  %1748 = vmatprep.subr.mxu0 0.0
  %v1749 = vand.u32 %v31, 4294901760
  %v1750 = vsub.f32 %v31, %v1749
  %v1751 = vand.u32 %v1750, 4294901760
  %1752 = vmatpush1.msra.mxu0 %v1751
  %1753 = vmatprep.subr.mxu0 0.0
  %v1754 = vand.u32 %v32, 4294901760
  %v1755 = vsub.f32 %v32, %v1754
  %v1756 = vand.u32 %v1755, 4294901760
  %1757 = vmatpush1.msra.mxu0 %v1756
  %1758 = vmatprep.subr.mxu0 0.0
  %v1759 = vand.u32 %v33, 4294901760
  %v1760 = vsub.f32 %v33, %v1759
  %v1761 = vand.u32 %v1760, 4294901760
  %1762 = vmatpush1.msra.mxu0 %v1761
  %1763 = vmatprep.subr.mxu0 0.0
  %v1764 = vand.u32 %v34, 4294901760
  %v1765 = vsub.f32 %v34, %v1764
  %v1766 = vand.u32 %v1765, 4294901760
  %1767 = vmatpush1.msra.mxu0 %v1766
  %1768 = vmatprep.subr.mxu0 0.0
  %v1769 = vand.u32 %v35, 4294901760
  %v1770 = vsub.f32 %v35, %v1769
  %v1771 = vand.u32 %v1770, 4294901760
  %1772 = vmatpush1.msra.mxu0 %v1771
  %1773 = vmatprep.subr.mxu0 0.0
  %v1774 = vand.u32 %v36, 4294901760
  %v1775 = vsub.f32 %v36, %v1774
  %v1776 = vand.u32 %v1775, 4294901760
  %1777 = vmatpush1.msra.mxu0 %v1776
  %1778 = vmatprep.subr.mxu0 0.0
  %v1779 = vand.u32 %v37, 4294901760
  %v1780 = vsub.f32 %v37, %v1779
  %v1781 = vand.u32 %v1780, 4294901760
  %1782 = vmatpush1.msra.mxu0 %v1781
  %1783 = vmatprep.subr.mxu0 0.0
  %v1784 = vand.u32 %v38, 4294901760
  %v1785 = vsub.f32 %v38, %v1784
  %v1786 = vand.u32 %v1785, 4294901760
  %1787 = vmatpush1.msra.mxu0 %v1786
  %1788 = vmatprep.subr.mxu0 0.0
  %v1789 = vand.u32 %v39, 4294901760
  %v1790 = vsub.f32 %v39, %v1789
  %v1791 = vand.u32 %v1790, 4294901760
  %1792 = vmatpush1.msra.mxu0 %v1791
  %1793 = vmatprep.subr.mxu0 0.0
  %v1794 = vand.u32 %v40, 4294901760
  %v1795 = vsub.f32 %v40, %v1794
  %v1796 = vand.u32 %v1795, 4294901760
  %1797 = vmatpush1.msra.mxu0 %v1796
  %1798 = vmatprep.subr.mxu0 0.0
  %v1799 = vand.u32 %v41, 4294901760
  %v1800 = vsub.f32 %v41, %v1799
  %v1801 = vand.u32 %v1800, 4294901760
  %1802 = vmatpush1.msra.mxu0 %v1801
  %1803 = vmatprep.subr.mxu0 0.0
  %v1804 = vand.u32 %v42, 4294901760
  %v1805 = vsub.f32 %v42, %v1804
  %v1806 = vand.u32 %v1805, 4294901760
  %1807 = vmatpush1.msra.mxu0 %v1806
  %1808 = vmatprep.subr.mxu0 0.0
  %v1809 = vand.u32 %v43, 4294901760
  %v1810 = vsub.f32 %v43, %v1809
  %v1811 = vand.u32 %v1810, 4294901760
  %1812 = vmatpush1.msra.mxu0 %v1811
  %1813 = vmatprep.subr.mxu0 0.0
  %v1814 = vand.u32 %v44, 4294901760
  %v1815 = vsub.f32 %v44, %v1814
  %v1816 = vand.u32 %v1815, 4294901760
  %1817 = vmatpush1.msra.mxu0 %v1816
  %1818 = vmatprep.subr.mxu0 0.0
  %v1819 = vand.u32 %v45, 4294901760
  %v1820 = vsub.f32 %v45, %v1819
  %v1821 = vand.u32 %v1820, 4294901760
  %1822 = vmatpush1.msra.mxu0 %v1821
  %1823 = vmatprep.subr.mxu0 0.0
  %v1824 = vand.u32 %v46, 4294901760
  %v1825 = vsub.f32 %v46, %v1824
  %v1826 = vand.u32 %v1825, 4294901760
  %1827 = vmatpush1.msra.mxu0 %v1826
  %1828 = vmatprep.subr.mxu0 0.0
  %1829 = vmatpush1.msra.mxu0 0.0
  %1830 = vmatprep.subr.mxu0 0.0
  %1831 = vmatpush1.msra.mxu0 0.0
  %1832 = vmatprep.subr.mxu0 0.0
  %1833 = vmatpush1.msra.mxu0 0.0
  %1834 = vmatprep.subr.mxu0 0.0
  %1835 = vmatpush1.msra.mxu0 0.0
  %1836 = vmatprep.subr.mxu0 0.0
  %1837 = vmatpush1.msra.mxu0 0.0
  %1838 = vmatprep.subr.mxu0 0.0
  %1839 = vmatpush1.msra.mxu0 0.0
  %1840 = vmatprep.subr.mxu0 0.0
  %1841 = vmatpush1.msra.mxu0 0.0
  %1842 = vmatprep.subr.mxu0 0.0
  %1843 = vmatpush1.msra.mxu0 0.0
  %1844 = vmatprep.subr.mxu0 0.0
  %1845 = vmatpush1.msra.mxu0 0.0
  %1846 = vmatprep.subr.mxu0 0.0
  %1847 = vmatpush1.msra.mxu0 0.0
  %1848 = vmatprep.subr.mxu0 0.0
  %1849 = vmatpush1.msra.mxu0 0.0
  %1850 = vmatprep.subr.mxu0 0.0
  %1851 = vmatpush1.msra.mxu0 0.0
  %1852 = vmatprep.subr.mxu0 0.0
  %1853 = vmatpush1.msra.mxu0 0.0
  %1854 = vmatprep.subr.mxu0 0.0
  %1855 = vmatpush1.msra.mxu0 0.0
  %1856 = vmatprep.subr.mxu0 0.0
  %1857 = vmatpush1.msra.mxu0 0.0
  %1858 = vmatprep.subr.mxu0 0.0
  %1859 = vmatpush1.msra.mxu0 0.0
  %1860 = vmatprep.mubr.f32.mxu0 0.0
  %v1861 = vand.u32 %v977, 4294901760
  %1862 = vmatmul.mubr.f32.gmra.mrb[0].mxu0 %v1861
  %v1863 = vpop.f32.mrb[0].mxu0
  %v1864 = vadd.f32 %v1673, %v1863
  %v1865 = vpop.f32.mrb[0].mxu0
  %1866 = vmatprep.mubr.f32.mxu0 0.0
  %v1867 = vand.u32 %v983, 4294901760
  %1868 = vmatmul.mubr.f32.gmra.mrb[0].mxu0 %v1867
  %v1869 = vpop.f32.mrb[0].mxu0
  %v1870 = vadd.f32 %v1681, %v1869
  %v1871 = vpop.f32.mrb[0].mxu0
  %1872 = vmatprep.mubr.f32.mxu0 0.0
  %v1873 = vand.u32 %v989, 4294901760
  %1874 = vmatmul.mubr.f32.gmra.mrb[0].mxu0 %v1873
  %v1875 = vpop.f32.mrb[0].mxu0
  %v1876 = vadd.f32 %v1689, %v1875
  %v1877 = vpop.f32.mrb[0].mxu0
  %1878 = vmatprep.mubr.f32.mxu0 0.0
  %v1879 = vand.u32 %v995, 4294901760
  %1880 = vmatmul.mubr.f32.gmra.mrb[0].mxu0 %v1879
  %v1881 = vpop.f32.mrb[0].mxu0
  %v1882 = vadd.f32 %v1697, %v1881
  %v1883 = vpop.f32.mrb[0].mxu0
  %1884 = vmatprep.mubr.f32.mxu0 0.0
  %v1885 = vand.u32 %v1001, 4294901760
  %1886 = vmatmul.mubr.f32.gmra.mrb[0].mxu0 %v1885
  %v1887 = vpop.f32.mrb[0].mxu0
  %v1888 = vadd.f32 %v1705, %v1887
  %v1889 = vpop.f32.mrb[0].mxu0
  %1890 = vmatprep.mubr.f32.mxu0 0.0
  %v1891 = vand.u32 %v1007, 4294901760
  %1892 = vmatmul.mubr.f32.gmra.mrb[0].mxu0 %v1891
  %v1893 = vpop.f32.mrb[0].mxu0
  %v1894 = vadd.f32 %v1713, %v1893
  %v1895 = vpop.f32.mrb[0].mxu0
  %1896 = vmatprep.mubr.f32.mxu0 0.0
  %v1897 = vand.u32 %v1013, 4294901760
  %1898 = vmatmul.mubr.f32.gmra.mrb[0].mxu0 %v1897
  %v1899 = vpop.f32.mrb[0].mxu0
  %v1900 = vadd.f32 %v1721, %v1899
  %v1901 = vpop.f32.mrb[0].mxu0
  %1902 = vmatprep.mubr.f32.mxu0 0.0
  %v1903 = vand.u32 %v1019, 4294901760
  %1904 = vmatmul.mubr.f32.gmra.mrb[0].mxu0 %v1903
  %v1905 = vpop.f32.mrb[0].mxu0
  %v1906 = vadd.f32 %v1729, %v1905
  %v1907 = vpop.f32.mrb[0].mxu0
  %1908 = vmatprep.mubr.f32.mxu0 0.0
  %v1909 = vand.u32 %v1025, 4294901760
  %1910 = vmatmul.mubr.f32.gmra.mrb[0].mxu0 %v1909
  %v1911 = vpop.f32.mrb[0].mxu0
  %v1912 = vadd.f32 %v1737, %v1911
  %v1913 = vpop.f32.mrb[0].mxu0
  %1914 = vmatprep.mubr.f32.mxu0 0.0
  %v1915 = vand.u32 %v1031, 4294901760
  %1916 = vmatmul.mubr.f32.gmra.mrb[0].mxu0 %v1915
  %v1917 = vpop.f32.mrb[0].mxu0
  %v1918 = vadd.f32 %v1745, %v1917
  %v1919 = vpop.f32.mrb[0].mxu0
  %1920 = vdwg.mxu0
  %1921 = vmatprep.subr.mxu0 0.0
  %v1922 = vand.u32 %v31, 4294901760
  %1923 = vmatpush1.msra.mxu0 %v1922
  %1924 = vmatprep.subr.mxu0 0.0
  %v1925 = vand.u32 %v32, 4294901760
  %1926 = vmatpush1.msra.mxu0 %v1925
  %1927 = vmatprep.subr.mxu0 0.0
  %v1928 = vand.u32 %v33, 4294901760
  %1929 = vmatpush1.msra.mxu0 %v1928
  %1930 = vmatprep.subr.mxu0 0.0
  %v1931 = vand.u32 %v34, 4294901760
  %1932 = vmatpush1.msra.mxu0 %v1931
  %1933 = vmatprep.subr.mxu0 0.0
  %v1934 = vand.u32 %v35, 4294901760
  %1935 = vmatpush1.msra.mxu0 %v1934
  %1936 = vmatprep.subr.mxu0 0.0
  %v1937 = vand.u32 %v36, 4294901760
  %1938 = vmatpush1.msra.mxu0 %v1937
  %1939 = vmatprep.subr.mxu0 0.0
  %v1940 = vand.u32 %v37, 4294901760
  %1941 = vmatpush1.msra.mxu0 %v1940
  %1942 = vmatprep.subr.mxu0 0.0
  %v1943 = vand.u32 %v38, 4294901760
  %1944 = vmatpush1.msra.mxu0 %v1943
  %1945 = vmatprep.subr.mxu0 0.0
  %v1946 = vand.u32 %v39, 4294901760
  %1947 = vmatpush1.msra.mxu0 %v1946
  %1948 = vmatprep.subr.mxu0 0.0
  %v1949 = vand.u32 %v40, 4294901760
  %1950 = vmatpush1.msra.mxu0 %v1949
  %1951 = vmatprep.subr.mxu0 0.0
  %v1952 = vand.u32 %v41, 4294901760
  %1953 = vmatpush1.msra.mxu0 %v1952
  %1954 = vmatprep.subr.mxu0 0.0
  %v1955 = vand.u32 %v42, 4294901760
  %1956 = vmatpush1.msra.mxu0 %v1955
  %1957 = vmatprep.subr.mxu0 0.0
  %v1958 = vand.u32 %v43, 4294901760
  %1959 = vmatpush1.msra.mxu0 %v1958
  %1960 = vmatprep.subr.mxu0 0.0
  %v1961 = vand.u32 %v44, 4294901760
  %1962 = vmatpush1.msra.mxu0 %v1961
  %1963 = vmatprep.subr.mxu0 0.0
  %v1964 = vand.u32 %v45, 4294901760
  %1965 = vmatpush1.msra.mxu0 %v1964
  %1966 = vmatprep.subr.mxu0 0.0
  %v1967 = vand.u32 %v46, 4294901760
  %1968 = vmatpush1.msra.mxu0 %v1967
  %1969 = vmatprep.subr.mxu0 0.0
  %1970 = vmatpush1.msra.mxu0 0.0
  %1971 = vmatprep.subr.mxu0 0.0
  %1972 = vmatpush1.msra.mxu0 0.0
  %1973 = vmatprep.subr.mxu0 0.0
  %1974 = vmatpush1.msra.mxu0 0.0
  %1975 = vmatprep.subr.mxu0 0.0
  %1976 = vmatpush1.msra.mxu0 0.0
  %1977 = vmatprep.subr.mxu0 0.0
  %1978 = vmatpush1.msra.mxu0 0.0
  %1979 = vmatprep.subr.mxu0 0.0
  %1980 = vmatpush1.msra.mxu0 0.0
  %1981 = vmatprep.subr.mxu0 0.0
  %1982 = vmatpush1.msra.mxu0 0.0
  %1983 = vmatprep.subr.mxu0 0.0
  %1984 = vmatpush1.msra.mxu0 0.0
  %1985 = vmatprep.subr.mxu0 0.0
  %1986 = vmatpush1.msra.mxu0 0.0
  %1987 = vmatprep.subr.mxu0 0.0
  %1988 = vmatpush1.msra.mxu0 0.0
  %1989 = vmatprep.subr.mxu0 0.0
  %1990 = vmatpush1.msra.mxu0 0.0
  %1991 = vmatprep.subr.mxu0 0.0
  %1992 = vmatpush1.msra.mxu0 0.0
  %1993 = vmatprep.subr.mxu0 0.0
  %1994 = vmatpush1.msra.mxu0 0.0
  %1995 = vmatprep.subr.mxu0 0.0
  %1996 = vmatpush1.msra.mxu0 0.0
  %1997 = vmatprep.subr.mxu0 0.0
  %1998 = vmatpush1.msra.mxu0 0.0
  %1999 = vmatprep.subr.mxu0 0.0
  %2000 = vmatpush1.msra.mxu0 0.0
  %2001 = vmatprep.mubr.f32.mxu0 0.0
  %v2002 = vand.u32 %v977, 4294901760
  %2003 = vmatmul.mubr.f32.gmra.mrb[0].mxu0 %v2002
  %v2004 = vpop.f32.mrb[0].mxu0
  %v2005 = vadd.f32 %v1864, %v2004
  %v2006 = vpop.f32.mrb[0].mxu0
  %2007 = vmatprep.mubr.f32.mxu0 0.0
  %v2008 = vand.u32 %v983, 4294901760
  %2009 = vmatmul.mubr.f32.gmra.mrb[0].mxu0 %v2008
  %v2010 = vpop.f32.mrb[0].mxu0
  %v2011 = vadd.f32 %v1870, %v2010
  %v2012 = vpop.f32.mrb[0].mxu0
  %2013 = vmatprep.mubr.f32.mxu0 0.0
  %v2014 = vand.u32 %v989, 4294901760
  %2015 = vmatmul.mubr.f32.gmra.mrb[0].mxu0 %v2014
  %v2016 = vpop.f32.mrb[0].mxu0
  %v2017 = vadd.f32 %v1876, %v2016
  %v2018 = vpop.f32.mrb[0].mxu0
  %2019 = vmatprep.mubr.f32.mxu0 0.0
  %v2020 = vand.u32 %v995, 4294901760
  %2021 = vmatmul.mubr.f32.gmra.mrb[0].mxu0 %v2020
  %v2022 = vpop.f32.mrb[0].mxu0
  %v2023 = vadd.f32 %v1882, %v2022
  %v2024 = vpop.f32.mrb[0].mxu0
  %2025 = vmatprep.mubr.f32.mxu0 0.0
  %v2026 = vand.u32 %v1001, 4294901760
  %2027 = vmatmul.mubr.f32.gmra.mrb[0].mxu0 %v2026
  %v2028 = vpop.f32.mrb[0].mxu0
  %v2029 = vadd.f32 %v1888, %v2028
  %v2030 = vpop.f32.mrb[0].mxu0
  %2031 = vmatprep.mubr.f32.mxu0 0.0
  %v2032 = vand.u32 %v1007, 4294901760
  %2033 = vmatmul.mubr.f32.gmra.mrb[0].mxu0 %v2032
  %v2034 = vpop.f32.mrb[0].mxu0
  %v2035 = vadd.f32 %v1894, %v2034
  %v2036 = vpop.f32.mrb[0].mxu0
  %2037 = vmatprep.mubr.f32.mxu0 0.0
  %v2038 = vand.u32 %v1013, 4294901760
  %2039 = vmatmul.mubr.f32.gmra.mrb[0].mxu0 %v2038
  %v2040 = vpop.f32.mrb[0].mxu0
  %v2041 = vadd.f32 %v1900, %v2040
  %v2042 = vpop.f32.mrb[0].mxu0
  %2043 = vmatprep.mubr.f32.mxu0 0.0
  %v2044 = vand.u32 %v1019, 4294901760
  %2045 = vmatmul.mubr.f32.gmra.mrb[0].mxu0 %v2044
  %v2046 = vpop.f32.mrb[0].mxu0
  %v2047 = vadd.f32 %v1906, %v2046
  %v2048 = vpop.f32.mrb[0].mxu0
  %2049 = vmatprep.mubr.f32.mxu0 0.0
  %v2050 = vand.u32 %v1025, 4294901760
  %2051 = vmatmul.mubr.f32.gmra.mrb[0].mxu0 %v2050
  %v2052 = vpop.f32.mrb[0].mxu0
  %v2053 = vadd.f32 %v1912, %v2052
  %v2054 = vpop.f32.mrb[0].mxu0
  %2055 = vmatprep.mubr.f32.mxu0 0.0
  %v2056 = vand.u32 %v1031, 4294901760
  %2057 = vmatmul.mubr.f32.gmra.mrb[0].mxu0 %v2056
  %v2058 = vpop.f32.mrb[0].mxu0
  %v2059 = vadd.f32 %v1918, %v2058
  %v2060 = vpop.f32.mrb[0].mxu0
  %2061 = vdwg.mxu0
  %v2062 = vmul.f32 %v2005, %v2005
  %v2063 = vmul.f32 %v2011, %v2011
  %v2064 = vmul.f32 %v2017, %v2017
  %v2065 = vmul.f32 %v2023, %v2023
  %v2066 = vmul.f32 %v2005, %v2017
  %v2067 = vmul.f32 %v2011, %v2023
  %v2068 = vsub.f32 %v2029, %v2062
  %v2069 = vsub.f32 %v2035, %v2063
  %v2070 = vsub.f32 %v2041, %v2064
  %v2071 = vsub.f32 %v2047, %v2065
  %v2072 = vsub.f32 %v2053, %v2066
  %v2073 = vsub.f32 %v2059, %v2067
  %v2074 = vmul.f32 %v2066, 2.0
  %v2075 = vmul.f32 %v2067, 2.0
  %v2076 = vadd.f32 %v2074, 0.0001
  %v2077 = vadd.f32 %v2075, 0.0001
  %v2078 = vmul.f32 %v2072, 2.0
  %v2079 = vmul.f32 %v2073, 2.0
  %v2080 = vadd.f32 %v2078, 0.0009
  %v2081 = vadd.f32 %v2079, 0.0009
  %v2082 = vmul.f32 %v2076, %v2080
  %v2083 = vmul.f32 %v2077, %v2081
  %v2084 = vadd.f32 %v2062, %v2064
  %v2085 = vadd.f32 %v2063, %v2065
  %v2086 = vadd.f32 %v2084, 0.0001
  %v2087 = vadd.f32 %v2085, 0.0001
  %v2088 = vadd.f32 %v2068, %v2070
  %v2089 = vadd.f32 %v2069, %v2071
  %v2090 = vadd.f32 %v2088, 0.0009
  %v2091 = vadd.f32 %v2089, 0.0009
  %v2092 = vmul.f32 %v2086, %v2090
  %v2093 = vmul.f32 %v2087, %v2091
  %v2094 = vrcp.pop %v2092
  %v2095 = vmul.f32 %v2082, %v2094
  %v2096 = vrcp.pop %v2093
  %v2097 = vmul.f32 %v2083, %v2096
  %v2098 = vadd.f32 %v2095, %v2097
  %v2099 = vrot.slane %v2098, 4
  %v2100 = vadd.f32 %v2098, %v2099
  %v2101 = vrot.slane %v2100, 2
  %v2102 = vadd.f32 %v2100, %v2101
  %v2103 = vrot.slane %v2102, 1
  %v2104 = vadd.f32 %v2102, %v2103
  %2105 = vst [vmem:[%s4] sm:$0x1] %v2104
  // Predicated region
  $region18: #{ssim_loss.1} parent=0 // pred_check
    _
  $region19: #{ssim_loss.1} parent=0 // pred_check_branch
    %2107 = sbr.rel (0) target = $region21
  $region20: #{ssim_loss.1} parent=0 // pred_region
    _
  $region21: #{ssim_loss.1} parent=0 // pred_fallthru
    _
  // Predicated region
  $region22: #{ssim_loss.1} parent=0 // pred_check
    _
  $region23: #{ssim_loss.1} parent=0 // pred_check_branch
    %2109 = sbr.rel (0) target = $region25
  $region24: #{ssim_loss.1} parent=0 // pred_region
    _
  $region25: #{ssim_loss.1} parent=0 // pred_fallthru
    _

</llo_original>
